<compile_context>
chip_gen: v6e
topology: v6e:2x2x1
jax: 0.10.0
libtpu: 0.0.40
codegen_flags: <defaults>
</compile_context>

<pallas_src>
import jax
import jax.numpy as jnp
from jax.experimental import pallas as pl
from jax.experimental.pallas import tpu as pltpu


# ---------------------------------------------------------------------------
# helpers
# ---------------------------------------------------------------------------
def _largest_divisor_leq(n: int, cap: int) -> int:
    cap = max(1, min(cap, n))
    for d in range(cap, 0, -1):
        if n % d == 0:
            return d
    return 1


def _stream_spec(shape, index_map, multibuffer: bool):
    """BlockSpec for a large streamed weight operand; optionally 3-deep buffered."""
    if multibuffer:
        return pl.BlockSpec(shape, index_map, pipeline_mode=pl.Buffered(3))
    return pl.BlockSpec(shape, index_map)


# ---------------------------------------------------------------------------
# Kernel A: pointwise "conv" MLP over vertices (3->32->64->128, relu each).
# Rows (= B*V vertices) on sublanes, channels on lanes.  f32 math, bf16 store.
# ---------------------------------------------------------------------------
def feat_kernel(x_ref, w1_ref, b1_ref, w2_ref, b2_ref, w3_ref, b3_ref, o_ref):
    h = jnp.dot(x_ref[...], w1_ref[...], preferred_element_type=jnp.float32) + b1_ref[...]
    h = jnp.maximum(h, 0.0)
    h = jnp.dot(h, w2_ref[...], preferred_element_type=jnp.float32) + b2_ref[...]
    h = jnp.maximum(h, 0.0)
    h = jnp.dot(h, w3_ref[...], preferred_element_type=jnp.float32) + b3_ref[...]
    o_ref[...] = jnp.maximum(h, 0.0).astype(o_ref.dtype)


# ---------------------------------------------------------------------------
# Kernel B: fc1 as a streamed K-reduction over a 256-wide column half:
#   (B, K)[bf16] @ (K, 256)[bf16] -> f32 accumulate -> +bias, relu -> bf16.
# Grid = (column_half, k); k is the innermost "arbitrary" reduction axis.
# ---------------------------------------------------------------------------
def fc1_kernel(x_ref, w_ref, b_ref, o_ref, acc_ref):
    k = pl.program_id(1)

    @pl.when(k == 0)
    def _():
        acc_ref[...] = jnp.zeros_like(acc_ref)

    acc_ref[...] += jnp.dot(x_ref[...], w_ref[...],
                            preferred_element_type=jnp.float32)

    @pl.when(k == pl.num_programs(1) - 1)
    def _():
        o_ref[...] = jnp.maximum(acc_ref[...] + b_ref[...], 0.0).astype(o_ref.dtype)


# ---------------------------------------------------------------------------
# Kernel C: fc2 as an N-tiled matmul: (B, 512)[bf16] @ (512, tn)[bf16] + bias.
# ---------------------------------------------------------------------------
def fc2_kernel(h_ref, w_ref, b_ref, o_ref):
    o_ref[...] = (
        jnp.dot(h_ref[...], w_ref[...], preferred_element_type=jnp.float32)
        + b_ref[...]
    )


# ---------------------------------------------------------------------------
# Forward pass
# ---------------------------------------------------------------------------
def mesh_gnn_forward(x, prepared, max_points, *,
                     tm_rows=4096, tk_vertices=128, tn_cols=4096,
                     multibuffer=True):
    """x: (B, V, 3) float32; prepared = prepare_params(...). Returns (B, P, 2) f32."""
    w1p, b1, w2, b2, w3, b3, wf1p, bf1, wf2p, bf2p = prepared
    B, V, _ = x.shape
    rows = B * V

    # ----- conv stage: row-tiled over B*V ----------------------------------
    x2 = jnp.pad(x.reshape(rows, 3), ((0, 0), (0, 5)))   # Cin 3 -> 8 (zero pad)

    tm = min(tm_rows, rows)
    if tm < rows:
        tm = max(16, (tm // 16) * 16)                     # bf16 output tile alignment
    grid_m = pl.cdiv(rows, tm)

    feats = pl.pallas_call(
        feat_kernel,
        out_shape=jax.ShapeDtypeStruct((rows, 128), jnp.bfloat16),
        grid=(grid_m,),
        in_specs=[
            pl.BlockSpec((tm, 8), lambda i: (i, 0)),
            pl.BlockSpec((8, 32), lambda i: (0, 0)),
            pl.BlockSpec((1, 32), lambda i: (0, 0)),
            pl.BlockSpec((32, 64), lambda i: (0, 0)),
            pl.BlockSpec((1, 64), lambda i: (0, 0)),
            pl.BlockSpec((64, 128), lambda i: (0, 0)),
            pl.BlockSpec((1, 128), lambda i: (0, 0)),
        ],
        out_specs=pl.BlockSpec((tm, 128), lambda i: (i, 0)),
        compiler_params=pltpu.CompilerParams(dimension_semantics=("parallel",)),
    )(x2, w1p, b1, w2, b2, w3, b3)

    # ----- fc1: streamed K-reduction, output columns split in two halves ----
    # wf1p rows were pre-permuted to (v*128 + c) order, so feats is used in its
    # natural (B, V*128) layout -- no transpose between the two stages.
    K = V * 128
    flat = feats.reshape(B, K)

    tkv = _largest_divisor_leq(V, tk_vertices)    # tk divides K exactly
    tk = 128 * tkv
    grid_k = K // tk
    NH = 256                                      # column half of fc1's 512 outputs

    h512 = pl.pallas_call(
        fc1_kernel,
        out_shape=jax.ShapeDtypeStruct((B, 512), jnp.bfloat16),
        grid=(2, grid_k),
        in_specs=[
            pl.BlockSpec((B, tk), lambda j, k: (0, k)),
            _stream_spec((tk, NH), lambda j, k: (k, j), multibuffer),
            pl.BlockSpec((1, NH), lambda j, k: (0, j)),
        ],
        out_specs=pl.BlockSpec((B, NH), lambda j, k: (0, j)),
        scratch_shapes=[pltpu.VMEM((B, NH), jnp.float32)],
        compiler_params=pltpu.CompilerParams(
            dimension_semantics=("parallel", "arbitrary"),
            vmem_limit_bytes=48 * 1024 * 1024,    # fits v7x's 64 MiB physical VMEM
        ),
    )(flat, wf1p, bf1)

    # ----- fc2: N-tiled, lane-dense (columns pre-padded to multiple of 128) --
    N = 2 * max_points
    N_pad = wf2p.shape[1]
    tn = min(tn_cols, N_pad)
    tn = max(128, (tn // 128) * 128)
    grid_n = pl.cdiv(N_pad, tn)

    out = pl.pallas_call(
        fc2_kernel,
        out_shape=jax.ShapeDtypeStruct((B, N_pad), jnp.float32),
        grid=(grid_n,),
        in_specs=[
            pl.BlockSpec((B, 512), lambda j: (0, 0)),
            _stream_spec((512, tn), lambda j: (0, j), multibuffer),
            pl.BlockSpec((1, tn), lambda j: (0, j)),
        ],
        out_specs=pl.BlockSpec((B, tn), lambda j: (0, j)),
        compiler_params=pltpu.CompilerParams(
            dimension_semantics=("parallel",),
            vmem_limit_bytes=32 * 1024 * 1024,
        ),
    )(h512, wf2p, bf2p)

    # ----- x.view(-1, max_points, 2) -----------------------------------------
    return out[:, :N].reshape(B, max_points, 2)


# ---------------------------------------------------------------------------
# Parameters (PyTorch-equivalent layout) and one-time kernel preparation
# ---------------------------------------------------------------------------
def init_params(key, max_vertices, max_points):
    """Synthetic params. Conv1d(k=1) weights stored as (in, out); Linear as (in, out);
    fc1 rows are in PyTorch channel-major flatten order (k = c*V + v)."""
    ks = jax.random.split(key, 10)
    s = 0.05
    w1 = jax.random.normal(ks[0], (3, 32), jnp.float32) * s
    b1 = jax.random.normal(ks[1], (1, 32), jnp.float32) * s
    w2 = jax.random.normal(ks[2], (32, 64), jnp.float32) * s
    b2 = jax.random.normal(ks[3], (1, 64), jnp.float32) * s
    w3 = jax.random.normal(ks[4], (64, 128), jnp.float32) * s
    b3 = jax.random.normal(ks[5], (1, 128), jnp.float32) * s
    wf1 = jax.random.normal(ks[6], (128 * max_vertices, 512), jnp.float32) * s
    bf1 = jax.random.normal(ks[7], (1, 512), jnp.float32) * s
    wf2 = jax.random.normal(ks[8], (512, max_points * 2), jnp.float32) * s
    bf2 = jax.random.normal(ks[9], (1, max_points * 2), jnp.float32) * s
    return (w1, b1, w2, b2, w3, b3, wf1, bf1, wf2, bf2)


def prepare_params(params, max_vertices, head_dtype=jnp.bfloat16):
    """One-time (inference-free) weight prep:
    - pad conv1 input channels 3 -> 8,
    - permute wf1 rows from torch flatten order (c*V+v) to vertex-major (v*128+c),
    - cast the big head weights to `head_dtype` (bf16 halves the HBM stream),
    - pad fc2 columns (and bias) to a multiple of 128 for lane-dense output tiles."""
    w1, b1, w2, b2, w3, b3, wf1, bf1, wf2, bf2 = params
    V = max_vertices
    w1p = jnp.zeros((8, 32), jnp.float32).at[:3, :].set(w1)
    wf1p = wf1.reshape(128, V, 512).transpose(1, 0, 2).reshape(V * 128, 512)
    wf1p = wf1p.astype(head_dtype)
    N = wf2.shape[1]
    N_pad = ((N + 127) // 128) * 128
    wf2p = jnp.pad(wf2, ((0, 0), (0, N_pad - N))).astype(head_dtype)
    bf2p = jnp.pad(bf2, ((0, 0), (0, N_pad - N)))     # bias stays f32
    return (w1p, b1, w2, b2, w3, b3, wf1p, bf1, wf2p, bf2p)


# ---------------------------------------------------------------------------
# References
# ---------------------------------------------------------------------------
def reference_forward(x, params, max_points):
    """Pure-JAX f32 reference mirroring the PyTorch module exactly."""
    w1, b1, w2, b2, w3, b3, wf1, bf1, wf2, bf2 = params
    B, V, _ = x.shape
    h = jax.nn.relu(jnp.einsum("bvc,cd->bvd", x, w1) + b1)     # conv1 (k=1)
    h = jax.nn.relu(jnp.einsum("bvc,cd->bvd", h, w2) + b2)     # conv2
    h = jax.nn.relu(jnp.einsum("bvc,cd->bvd", h, w3) + b3)     # conv3
    flat = h.transpose(0, 2, 1).reshape(B, 128 * V)            # (B,128,V).view(B,-1)
    h = jax.nn.relu(flat @ wf1 + bf1)                          # fc1
    out = h @ wf2 + bf2                                        # fc2
    return out.reshape(B, max_points, 2)


def reference_forward_quant(x, params, max_points):
    """Reference emulating the kernel's mixed precision: f32 conv math, bf16
    activations at the head matmul inputs, bf16 head weights, f32 accumulation."""
    w1, b1, w2, b2, w3, b3, wf1, bf1, wf2, bf2 = params
    B, V, _ = x.shape
    h = jax.nn.relu(jnp.einsum("bvc,cd->bvd", x, w1) + b1)
    h = jax.nn.relu(jnp.einsum("bvc,cd->bvd", h, w2) + b2)
    h = jax.nn.relu(jnp.einsum("bvc,cd->bvd", h, w3) + b3)
    h = h.astype(jnp.bfloat16).astype(jnp.float32)
    flat = h.transpose(0, 2, 1).reshape(B, 128 * V)
    wf1q = wf1.astype(jnp.bfloat16).astype(jnp.float32)
    h = jax.nn.relu(flat @ wf1q + bf1)
    h = h.astype(jnp.bfloat16).astype(jnp.float32)
    wf2q = wf2.astype(jnp.bfloat16).astype(jnp.float32)
    out = h @ wf2q + bf2
    return out.reshape(B, max_points, 2)


if __name__ == "__main__":
    # Small shapes consistent with the module (original: V=17664, P=20000).
    # Chosen so the conv grid, the fc1 K-reduction (with its 2-way column split),
    # and the fc2 N-tiling all take multiple grid steps.
    B = 2
    MAX_VERTICES = 32
    MAX_POINTS = 16

    key = jax.random.PRNGKey(0)
    k_x, k_p = jax.random.split(key)
    x = jax.random.normal(k_x, (B, MAX_VERTICES, 3), jnp.float32)
    params = init_params(k_p, MAX_VERTICES, MAX_POINTS)
    prepared = prepare_params(params, MAX_VERTICES, head_dtype=jnp.bfloat16)

    def run(multibuffer):
        return jax.block_until_ready(
            mesh_gnn_forward(x, prepared, MAX_POINTS,
                             tm_rows=16, tk_vertices=8, tn_cols=128,
                             multibuffer=multibuffer))

    try:
        out = run(multibuffer=True)
    except Exception:
        # Fallback if this JAX build doesn't support pipeline_mode=pl.Buffered.
        out = run(multibuffer=False)

    ref_q = reference_forward_quant(x, params, MAX_POINTS)
    ref_f = reference_forward(x, params, MAX_POINTS)

    assert out.shape == (B, MAX_POINTS, 2), out.shape
    assert jnp.allclose(out, ref_q, atol=2e-2, rtol=2e-2), "mismatch vs quant-emulating reference"
    assert jnp.allclose(out, ref_f, atol=6e-2, rtol=6e-2), "mismatch vs f32 reference"

    print("KERNEL_OK")
</pallas_src>

<mosaic_0001>
module attributes {stable_mosaic.version = 11 : i64} {
  func.func @feat_kernel(%arg0: i32, %arg1: memref<16x8xf32, #tpu.memory_space<vmem>>, %arg2: memref<8x32xf32, #tpu.memory_space<vmem>>, %arg3: memref<1x32xf32, #tpu.memory_space<vmem>>, %arg4: memref<32x64xf32, #tpu.memory_space<vmem>>, %arg5: memref<1x64xf32, #tpu.memory_space<vmem>>, %arg6: memref<64x128xf32, #tpu.memory_space<vmem>>, %arg7: memref<1x128xf32, #tpu.memory_space<vmem>>, %arg8: memref<16x128xbf16, #tpu.memory_space<vmem>>) attributes {dimension_semantics = [#tpu.dimension_semantics<parallel>], iteration_bounds = array<i64: 4>, scalar_prefetch = 0 : i64, scratch_operands = 0 : i64, tpu.core_type = #tpu.core_type<tc>, window_params = [{transform_indices = @transform_0, window_bounds = array<i64: 16, 8>}, {pipeline_mode = #tpu.pipeline_mode<synchronous>, transform_indices = @transform_1, window_bounds = array<i64: 8, 32>}, {pipeline_mode = #tpu.pipeline_mode<synchronous>, transform_indices = @transform_2, window_bounds = array<i64: 1, 32>}, {pipeline_mode = #tpu.pipeline_mode<synchronous>, transform_indices = @transform_3, window_bounds = array<i64: 32, 64>}, {pipeline_mode = #tpu.pipeline_mode<synchronous>, transform_indices = @transform_4, window_bounds = array<i64: 1, 64>}, {pipeline_mode = #tpu.pipeline_mode<synchronous>, transform_indices = @transform_5, window_bounds = array<i64: 64, 128>}, {pipeline_mode = #tpu.pipeline_mode<synchronous>, transform_indices = @transform_6, window_bounds = array<i64: 1, 128>}, {transform_indices = @transform_7, window_bounds = array<i64: 16, 128>}]} {
    %c0 = arith.constant 0 : index
    %c0_0 = arith.constant 0 : index
    %0 = vector.load %arg1[%c0, %c0_0] : memref<16x8xf32, #tpu.memory_space<vmem>>, vector<16x8xf32>
    %c0_1 = arith.constant 0 : index
    %c0_2 = arith.constant 0 : index
    %1 = vector.load %arg2[%c0_1, %c0_2] : memref<8x32xf32, #tpu.memory_space<vmem>>, vector<8x32xf32>
    %cst = arith.constant dense<0.000000e+00> : vector<16x32xf32>
    %2 = tpu.matmul %0, %1, %cst {dimension_numbers = #tpu.dot_dimension_numbers<[1], [0], [0], [1], [0, 0, 1, 1], [], []>} : vector<16x8xf32>, vector<8x32xf32>, vector<16x32xf32> -> vector<16x32xf32>
    %c0_3 = arith.constant 0 : index
    %c0_4 = arith.constant 0 : index
    %3 = vector.load %arg3[%c0_3, %c0_4] : memref<1x32xf32, #tpu.memory_space<vmem>>, vector<1x32xf32>
    %4 = vector.broadcast %3 : vector<1x32xf32> to vector<16x32xf32>
    %5 = arith.addf %2, %4 : vector<16x32xf32>
    %cst_5 = arith.constant 0.000000e+00 : f32
    %6 = vector.broadcast %cst_5 : f32 to vector<16x32xf32>
    %7 = arith.maximumf %5, %6 : vector<16x32xf32>
    %c0_6 = arith.constant 0 : index
    %c0_7 = arith.constant 0 : index
    %8 = vector.load %arg4[%c0_6, %c0_7] : memref<32x64xf32, #tpu.memory_space<vmem>>, vector<32x64xf32>
    %cst_8 = arith.constant dense<0.000000e+00> : vector<16x64xf32>
    %9 = tpu.matmul %7, %8, %cst_8 {dimension_numbers = #tpu.dot_dimension_numbers<[1], [0], [0], [1], [0, 0, 1, 1], [], []>} : vector<16x32xf32>, vector<32x64xf32>, vector<16x64xf32> -> vector<16x64xf32>
    %c0_9 = arith.constant 0 : index
    %c0_10 = arith.constant 0 : index
    %10 = vector.load %arg5[%c0_9, %c0_10] : memref<1x64xf32, #tpu.memory_space<vmem>>, vector<1x64xf32>
    %11 = vector.broadcast %10 : vector<1x64xf32> to vector<16x64xf32>
    %12 = arith.addf %9, %11 : vector<16x64xf32>
    %cst_11 = arith.constant 0.000000e+00 : f32
    %13 = vector.broadcast %cst_11 : f32 to vector<16x64xf32>
    %14 = arith.maximumf %12, %13 : vector<16x64xf32>
    %c0_12 = arith.constant 0 : index
    %c0_13 = arith.constant 0 : index
    %15 = vector.load %arg6[%c0_12, %c0_13] : memref<64x128xf32, #tpu.memory_space<vmem>>, vector<64x128xf32>
    %cst_14 = arith.constant dense<0.000000e+00> : vector<16x128xf32>
    %16 = tpu.matmul %14, %15, %cst_14 {dimension_numbers = #tpu.dot_dimension_numbers<[1], [0], [0], [1], [0, 0, 1, 1], [], []>} : vector<16x64xf32>, vector<64x128xf32>, vector<16x128xf32> -> vector<16x128xf32>
    %c0_15 = arith.constant 0 : index
    %c0_16 = arith.constant 0 : index
    %17 = vector.load %arg7[%c0_15, %c0_16] : memref<1x128xf32, #tpu.memory_space<vmem>>, vector<1x128xf32>
    %18 = vector.broadcast %17 : vector<1x128xf32> to vector<16x128xf32>
    %19 = arith.addf %16, %18 : vector<16x128xf32>
    %cst_17 = arith.constant 0.000000e+00 : f32
    %20 = vector.broadcast %cst_17 : f32 to vector<16x128xf32>
    %21 = arith.maximumf %19, %20 : vector<16x128xf32>
    %22 = arith.truncf %21 : vector<16x128xf32> to vector<16x128xbf16>
    %c0_18 = arith.constant 0 : index
    %c0_19 = arith.constant 0 : index
    %23 = vector.load %arg8[%c0_18, %c0_19] : memref<16x128xbf16, #tpu.memory_space<vmem>>, vector<16x128xbf16>
    tpu.vector_store %arg8[%c0_18, %c0_19], %22 {strides = array<i32>} : memref<16x128xbf16, #tpu.memory_space<vmem>>, vector<16x128xbf16>,
    return
  }
  func.func @transform_0(%arg0: i32) -> (i32, i32) {
    %c0_i32 = arith.constant 0 : i32
    %c0_i32_0 = arith.constant 0 : i32
    return %arg0, %c0_i32 : i32, i32
  }
  func.func @transform_1(%arg0: i32) -> (i32, i32) {
    %c0_i32 = arith.constant 0 : i32
    %c0_i32_0 = arith.constant 0 : i32
    %c0_i32_1 = arith.constant 0 : i32
    return %c0_i32, %c0_i32_0 : i32, i32
  }
  func.func @transform_2(%arg0: i32) -> (i32, i32) {
    %c0_i32 = arith.constant 0 : i32
    %c0_i32_0 = arith.constant 0 : i32
    %c0_i32_1 = arith.constant 0 : i32
    return %c0_i32, %c0_i32_0 : i32, i32
  }
  func.func @transform_3(%arg0: i32) -> (i32, i32) {
    %c0_i32 = arith.constant 0 : i32
    %c0_i32_0 = arith.constant 0 : i32
    %c0_i32_1 = arith.constant 0 : i32
    return %c0_i32, %c0_i32_0 : i32, i32
  }
  func.func @transform_4(%arg0: i32) -> (i32, i32) {
    %c0_i32 = arith.constant 0 : i32
    %c0_i32_0 = arith.constant 0 : i32
    %c0_i32_1 = arith.constant 0 : i32
    return %c0_i32, %c0_i32_0 : i32, i32
  }
  func.func @transform_5(%arg0: i32) -> (i32, i32) {
    %c0_i32 = arith.constant 0 : i32
    %c0_i32_0 = arith.constant 0 : i32
    %c0_i32_1 = arith.constant 0 : i32
    return %c0_i32, %c0_i32_0 : i32, i32
  }
  func.func @transform_6(%arg0: i32) -> (i32, i32) {
    %c0_i32 = arith.constant 0 : i32
    %c0_i32_0 = arith.constant 0 : i32
    %c0_i32_1 = arith.constant 0 : i32
    return %c0_i32, %c0_i32_0 : i32, i32
  }
  func.func @transform_7(%arg0: i32) -> (i32, i32) {
    %c0_i32 = arith.constant 0 : i32
    %c0_i32_0 = arith.constant 0 : i32
    return %arg0, %c0_i32 : i32, i32
  }
}

module attributes {stable_mosaic.version = 11 : i64} {
  func.func @feat_kernel(%arg0: i32, %arg1: memref<16x8xf32, #tpu.memory_space<vmem>>, %arg2: memref<8x32xf32, #tpu.memory_space<vmem>>, %arg3: memref<1x32xf32, #tpu.memory_space<vmem>>, %arg4: memref<32x64xf32, #tpu.memory_space<vmem>>, %arg5: memref<1x64xf32, #tpu.memory_space<vmem>>, %arg6: memref<64x128xf32, #tpu.memory_space<vmem>>, %arg7: memref<1x128xf32, #tpu.memory_space<vmem>>, %arg8: memref<16x128xbf16, #tpu.memory_space<vmem>>) attributes {dimension_semantics = [#tpu.dimension_semantics<parallel>], iteration_bounds = array<i64: 4>, scalar_prefetch = 0 : i64, scratch_operands = 0 : i64, tpu.core_type = #tpu.core_type<tc>, window_params = [{transform_indices = @transform_0, window_bounds = array<i64: 16, 8>}, {pipeline_mode = #tpu.pipeline_mode<synchronous>, transform_indices = @transform_1, window_bounds = array<i64: 8, 32>}, {pipeline_mode = #tpu.pipeline_mode<synchronous>, transform_indices = @transform_2, window_bounds = array<i64: 1, 32>}, {pipeline_mode = #tpu.pipeline_mode<synchronous>, transform_indices = @transform_3, window_bounds = array<i64: 32, 64>}, {pipeline_mode = #tpu.pipeline_mode<synchronous>, transform_indices = @transform_4, window_bounds = array<i64: 1, 64>}, {pipeline_mode = #tpu.pipeline_mode<synchronous>, transform_indices = @transform_5, window_bounds = array<i64: 64, 128>}, {pipeline_mode = #tpu.pipeline_mode<synchronous>, transform_indices = @transform_6, window_bounds = array<i64: 1, 128>}, {transform_indices = @transform_7, window_bounds = array<i64: 16, 128>}]} {
    %c0 = arith.constant 0 : index
    %c0_0 = arith.constant 0 : index
    %0 = vector.load %arg1[%c0, %c0_0] : memref<16x8xf32, #tpu.memory_space<vmem>>, vector<16x8xf32>
    %c0_1 = arith.constant 0 : index
    %c0_2 = arith.constant 0 : index
    %1 = vector.load %arg2[%c0_1, %c0_2] : memref<8x32xf32, #tpu.memory_space<vmem>>, vector<8x32xf32>
    %cst = arith.constant dense<0.000000e+00> : vector<16x32xf32>
    %2 = tpu.matmul %0, %1, %cst {dimension_numbers = #tpu.dot_dimension_numbers<[1], [0], [0], [1], [0, 0, 1, 1], [], []>} : vector<16x8xf32>, vector<8x32xf32>, vector<16x32xf32> -> vector<16x32xf32>
    %c0_3 = arith.constant 0 : index
    %c0_4 = arith.constant 0 : index
    %3 = vector.load %arg3[%c0_3, %c0_4] : memref<1x32xf32, #tpu.memory_space<vmem>>, vector<1x32xf32>
    %4 = vector.broadcast %3 : vector<1x32xf32> to vector<16x32xf32>
    %5 = arith.addf %2, %4 : vector<16x32xf32>
    %cst_5 = arith.constant 0.000000e+00 : f32
    %6 = vector.broadcast %cst_5 : f32 to vector<16x32xf32>
    %7 = arith.maximumf %5, %6 : vector<16x32xf32>
    %c0_6 = arith.constant 0 : index
    %c0_7 = arith.constant 0 : index
    %8 = vector.load %arg4[%c0_6, %c0_7] : memref<32x64xf32, #tpu.memory_space<vmem>>, vector<32x64xf32>
    %cst_8 = arith.constant dense<0.000000e+00> : vector<16x64xf32>
    %9 = tpu.matmul %7, %8, %cst_8 {dimension_numbers = #tpu.dot_dimension_numbers<[1], [0], [0], [1], [0, 0, 1, 1], [], []>} : vector<16x32xf32>, vector<32x64xf32>, vector<16x64xf32> -> vector<16x64xf32>
    %c0_9 = arith.constant 0 : index
    %c0_10 = arith.constant 0 : index
    %10 = vector.load %arg5[%c0_9, %c0_10] : memref<1x64xf32, #tpu.memory_space<vmem>>, vector<1x64xf32>
    %11 = vector.broadcast %10 : vector<1x64xf32> to vector<16x64xf32>
    %12 = arith.addf %9, %11 : vector<16x64xf32>
    %cst_11 = arith.constant 0.000000e+00 : f32
    %13 = vector.broadcast %cst_11 : f32 to vector<16x64xf32>
    %14 = arith.maximumf %12, %13 : vector<16x64xf32>
    %c0_12 = arith.constant 0 : index
    %c0_13 = arith.constant 0 : index
    %15 = vector.load %arg6[%c0_12, %c0_13] : memref<64x128xf32, #tpu.memory_space<vmem>>, vector<64x128xf32>
    %cst_14 = arith.constant dense<0.000000e+00> : vector<16x128xf32>
    %16 = tpu.matmul %14, %15, %cst_14 {dimension_numbers = #tpu.dot_dimension_numbers<[1], [0], [0], [1], [0, 0, 1, 1], [], []>} : vector<16x64xf32>, vector<64x128xf32>, vector<16x128xf32> -> vector<16x128xf32>
    %c0_15 = arith.constant 0 : index
    %c0_16 = arith.constant 0 : index
    %17 = vector.load %arg7[%c0_15, %c0_16] : memref<1x128xf32, #tpu.memory_space<vmem>>, vector<1x128xf32>
    %18 = vector.broadcast %17 : vector<1x128xf32> to vector<16x128xf32>
    %19 = arith.addf %16, %18 : vector<16x128xf32>
    %cst_17 = arith.constant 0.000000e+00 : f32
    %20 = vector.broadcast %cst_17 : f32 to vector<16x128xf32>
    %21 = arith.maximumf %19, %20 : vector<16x128xf32>
    %22 = arith.truncf %21 : vector<16x128xf32> to vector<16x128xbf16>
    %c0_18 = arith.constant 0 : index
    %c0_19 = arith.constant 0 : index
    %23 = vector.load %arg8[%c0_18, %c0_19] : memref<16x128xbf16, #tpu.memory_space<vmem>>, vector<16x128xbf16>
    tpu.vector_store %arg8[%c0_18, %c0_19], %22 {strides = array<i32>} : memref<16x128xbf16, #tpu.memory_space<vmem>>, vector<16x128xbf16>,
    return
  }
  func.func @transform_0(%arg0: i32) -> (i32, i32) {
    %c0_i32 = arith.constant 0 : i32
    %c0_i32_0 = arith.constant 0 : i32
    return %arg0, %c0_i32 : i32, i32
  }
  func.func @transform_1(%arg0: i32) -> (i32, i32) {
    %c0_i32 = arith.constant 0 : i32
    %c0_i32_0 = arith.constant 0 : i32
    %c0_i32_1 = arith.constant 0 : i32
    return %c0_i32, %c0_i32_0 : i32, i32
  }
  func.func @transform_2(%arg0: i32) -> (i32, i32) {
    %c0_i32 = arith.constant 0 : i32
    %c0_i32_0 = arith.constant 0 : i32
    %c0_i32_1 = arith.constant 0 : i32
    return %c0_i32, %c0_i32_0 : i32, i32
  }
  func.func @transform_3(%arg0: i32) -> (i32, i32) {
    %c0_i32 = arith.constant 0 : i32
    %c0_i32_0 = arith.constant 0 : i32
    %c0_i32_1 = arith.constant 0 : i32
    return %c0_i32, %c0_i32_0 : i32, i32
  }
  func.func @transform_4(%arg0: i32) -> (i32, i32) {
    %c0_i32 = arith.constant 0 : i32
    %c0_i32_0 = arith.constant 0 : i32
    %c0_i32_1 = arith.constant 0 : i32
    return %c0_i32, %c0_i32_0 : i32, i32
  }
  func.func @transform_5(%arg0: i32) -> (i32, i32) {
    %c0_i32 = arith.constant 0 : i32
    %c0_i32_0 = arith.constant 0 : i32
    %c0_i32_1 = arith.constant 0 : i32
    return %c0_i32, %c0_i32_0 : i32, i32
  }
  func.func @transform_6(%arg0: i32) -> (i32, i32) {
    %c0_i32 = arith.constant 0 : i32
    %c0_i32_0 = arith.constant 0 : i32
    %c0_i32_1 = arith.constant 0 : i32
    return %c0_i32, %c0_i32_0 : i32, i32
  }
  func.func @transform_7(%arg0: i32) -> (i32, i32) {
    %c0_i32 = arith.constant 0 : i32
    %c0_i32_0 = arith.constant 0 : i32
    return %arg0, %c0_i32 : i32, i32
  }
}

</mosaic_0001>

<llo_original>
// kernel: tpu_custom_call.1
$region0: #{tpu_custom_call.1}
  #allocation0 [shape = 'u32[]', space=smem, size = 0x4, offset = 0x4, fixed_abs, tag = 'smem constant byte address 0x4 - core index']
  #allocation1 [shape = 'u32[144,128]{1,0:T(1,128)}', space=vmem, size = 0x12000, scoped, tag = 'internal scratch']
  %s0 = inlined_call_operand.vmem [shape: f32[64,8], index: 0, kind: input, shape index: {}]
  %s1 = inlined_call_operand.vmem [shape: f32[8,32], index: 1, kind: input, shape index: {}]
  %s2 = inlined_call_operand.vmem [shape: f32[1,32], index: 2, kind: input, shape index: {}]
  %s3 = inlined_call_operand.hbm [shape: f32[32,64], index: 3, kind: input, shape index: {}]
  %s4 = inlined_call_operand.vmem [shape: f32[1,64], index: 4, kind: input, shape index: {}]
  %s5 = inlined_call_operand.vmem [shape: f32[64,128], index: 5, kind: input, shape index: {}]
  %s6 = inlined_call_operand.vmem [shape: f32[1,128], index: 6, kind: input, shape index: {}]
  %s7 = inlined_call_operand.hbm [shape: bf16[64,128], index: 7, kind: output, shape index: {}]
  %s8 = sld [smem:[#allocation0]]
  $region65: #{tpu_custom_call.1} parent=0
    _
  %s10 = ssub.s32 1, %s8
  %s11 = scalar_select 0, %s10, %s8
  $region1: #{tpu_custom_call.1} parent=0
    #allocation2 [shape = 'u8[16384]{0}', space=vmem, size = 0x4000, scoped, tag = 'input window, operand 3, single buffered']
    #allocation3 [shape = 's32[2]{0}', space=sflag, size = 0x8, scoped, tag = 'scoped memory for tpu_custom_call.1']
    #allocation4 [shape = 's32[2]{0}', space=sflag, size = 0x8, scoped, tag = 'scoped memory for tpu_custom_call.1']
    #allocation5 [shape = 'u8[8192]{0}', space=vmem, size = 0x2000, scoped, tag = 'output window, operand 0']
    %12 = vsyncpa [#allocation3], 0
    %13 = vsyncpa [#allocation4], 0
    %s14 = scalar_lea.sflag [#allocation4], 1
    %15 = vsyncpa %s14, 0
    loop: start=0, step=1, limit=6
    $region2: #{tpu_custom_call.1} parent=1 // loop_pre_header
      _
    $region3: #{tpu_custom_call.1} parent=1 // loop_header
      %s17 = sphi 0, %s21
      %p18 = scmp.ge.s32.totalorder %s17, 6
      %s27 = sphi 0, %s29
      %s30 = sphi 0, %s27
      %s31 = sphi 0, %s30
      %s47 = sphi 0, %s31
      %s51 = sphi 0, %s51
      %s53 = sphi 0, %s51
      %s54 = sphi 0, %s53
      %s68 = sphi 0, %s54
      %s72 = sphi 0, %s72
      %s74 = sphi 0, %s72
      %s75 = sphi 0, %s74
      %s89 = sphi 0, %s75
      %s93 = sphi 0, %s93
      %s95 = sphi 0, %s93
      %s96 = sphi 0, %s95
      %s110 = sphi 0, %s96
      %s114 = sphi 0, %s114
      %s116 = sphi 0, %s114
      %s117 = sphi 0, %s116
      %s131 = sphi 0, %s117
      %s135 = sphi 0, %s135
      %s137 = sphi 0, %s135
      %s138 = sphi 0, %s137
      %s152 = sphi 0, %s138
      %s156 = sphi 0, %s156
      %s158 = sphi 0, %s156
      %s159 = sphi 0, %s158
      %s173 = sphi 0, %s159
      %s179 = sphi 0, %s181
      %s182 = sphi 0, %s179
      %s183 = sphi 0, %s182
      %s199 = sphi 0, %s183
    $region4: #{tpu_custom_call.1} parent=1 // loop_header_branch
      %20 = sbr.rel (%p18) target = $region8
    $region5: #{tpu_custom_call.1} parent=1 // loop_body
      %s22 = ssub.s32 %s17, 1
      %s23 = ssub.s32 %s17, 2
      %s24 = sadd.s32 %s17, 1
      %s25 = ssub.s32 %s17, %s24
      %p26 = scmp.eq.s32.totalorder %s25, 0
      %s28 = sadd.s32 %s27, 1
      %s29 = scalar_select %p26, %s27, %s28
      %p32 = pneg %p26
      %p33 = scmp.eq.s32.totalorder %s17, 3
      %p34 = por %p32, %p33
      %p35 = scmp.ne.s32.totalorder %s27, %s30
      %p36 = scmp.eq.s32.totalorder %s17, 0
      %p37 = por %p35, %p36
      %p38 = scmp.ne.s32.totalorder %s27, %s30
      %p39 = scmp.eq.s32.totalorder %s22, 3
      %p40 = por %p38, %p39
      %p41 = scmp.ne.s32.totalorder %s30, %s31
      %p42 = scmp.eq.s32.totalorder %s22, 0
      %p43 = por %p41, %p42
      %p44 = scmp.ne.s32.totalorder %s30, %s31
      %p45 = scmp.eq.s32.totalorder %s23, 3
      %p46 = por %p44, %p45
      %p48 = scmp.ne.s32.totalorder %s31, %s47
      %p49 = scmp.eq.s32.totalorder %s23, 0
      %p50 = por %p48, %p49
      %s52 = sadd.s32 %s51, 1
      %p55 = scmp.eq.s32.totalorder %s17, 3
      %p56 = scmp.ne.s32.totalorder %s51, %s53
      %p57 = scmp.eq.s32.totalorder %s17, 0
      %p58 = por %p56, %p57
      %p59 = scmp.ne.s32.totalorder %s51, %s53
      %p60 = scmp.eq.s32.totalorder %s22, 3
      %p61 = por %p59, %p60
      %p62 = scmp.ne.s32.totalorder %s53, %s54
      %p63 = scmp.eq.s32.totalorder %s22, 0
      %p64 = por %p62, %p63
      %p65 = scmp.ne.s32.totalorder %s53, %s54
      %p66 = scmp.eq.s32.totalorder %s23, 3
      %p67 = por %p65, %p66
      %p69 = scmp.ne.s32.totalorder %s54, %s68
      %p70 = scmp.eq.s32.totalorder %s23, 0
      %p71 = por %p69, %p70
      %s73 = sadd.s32 %s72, 1
      %p76 = scmp.eq.s32.totalorder %s17, 3
      %p77 = scmp.ne.s32.totalorder %s72, %s74
      %p78 = scmp.eq.s32.totalorder %s17, 0
      %p79 = por %p77, %p78
      %p80 = scmp.ne.s32.totalorder %s72, %s74
      %p81 = scmp.eq.s32.totalorder %s22, 3
      %p82 = por %p80, %p81
      %p83 = scmp.ne.s32.totalorder %s74, %s75
      %p84 = scmp.eq.s32.totalorder %s22, 0
      %p85 = por %p83, %p84
      %p86 = scmp.ne.s32.totalorder %s74, %s75
      %p87 = scmp.eq.s32.totalorder %s23, 3
      %p88 = por %p86, %p87
      %p90 = scmp.ne.s32.totalorder %s75, %s89
      %p91 = scmp.eq.s32.totalorder %s23, 0
      %p92 = por %p90, %p91
      %s94 = sadd.s32 %s93, 1
      %p97 = scmp.eq.s32.totalorder %s17, 3
      %p98 = scmp.ne.s32.totalorder %s93, %s95
      %p99 = scmp.eq.s32.totalorder %s17, 0
      %p100 = por %p98, %p99
      %p101 = scmp.ne.s32.totalorder %s93, %s95
      %p102 = scmp.eq.s32.totalorder %s22, 3
      %p103 = por %p101, %p102
      %p104 = scmp.ne.s32.totalorder %s95, %s96
      %p105 = scmp.eq.s32.totalorder %s22, 0
      %p106 = por %p104, %p105
      %p107 = scmp.ne.s32.totalorder %s95, %s96
      %p108 = scmp.eq.s32.totalorder %s23, 3
      %p109 = por %p107, %p108
      %p111 = scmp.ne.s32.totalorder %s96, %s110
      %p112 = scmp.eq.s32.totalorder %s23, 0
      %p113 = por %p111, %p112
      %s115 = sadd.s32 %s114, 1
      %p118 = scmp.eq.s32.totalorder %s17, 3
      %p119 = scmp.ne.s32.totalorder %s114, %s116
      %p120 = scmp.eq.s32.totalorder %s17, 0
      %p121 = por %p119, %p120
      %p122 = scmp.ne.s32.totalorder %s114, %s116
      %p123 = scmp.eq.s32.totalorder %s22, 3
      %p124 = por %p122, %p123
      %p125 = scmp.ne.s32.totalorder %s116, %s117
      %p126 = scmp.eq.s32.totalorder %s22, 0
      %p127 = por %p125, %p126
      %p128 = scmp.ne.s32.totalorder %s116, %s117
      %p129 = scmp.eq.s32.totalorder %s23, 3
      %p130 = por %p128, %p129
      %p132 = scmp.ne.s32.totalorder %s117, %s131
      %p133 = scmp.eq.s32.totalorder %s23, 0
      %p134 = por %p132, %p133
      %s136 = sadd.s32 %s135, 1
      %p139 = scmp.eq.s32.totalorder %s17, 3
      %p140 = scmp.ne.s32.totalorder %s135, %s137
      %p141 = scmp.eq.s32.totalorder %s17, 0
      %p142 = por %p140, %p141
      %p143 = scmp.ne.s32.totalorder %s135, %s137
      %p144 = scmp.eq.s32.totalorder %s22, 3
      %p145 = por %p143, %p144
      %p146 = scmp.ne.s32.totalorder %s137, %s138
      %p147 = scmp.eq.s32.totalorder %s22, 0
      %p148 = por %p146, %p147
      %p149 = scmp.ne.s32.totalorder %s137, %s138
      %p150 = scmp.eq.s32.totalorder %s23, 3
      %p151 = por %p149, %p150
      %p153 = scmp.ne.s32.totalorder %s138, %s152
      %p154 = scmp.eq.s32.totalorder %s23, 0
      %p155 = por %p153, %p154
      %s157 = sadd.s32 %s156, 1
      %p160 = scmp.eq.s32.totalorder %s17, 3
      %p161 = scmp.ne.s32.totalorder %s156, %s158
      %p162 = scmp.eq.s32.totalorder %s17, 0
      %p163 = por %p161, %p162
      %p164 = scmp.ne.s32.totalorder %s156, %s158
      %p165 = scmp.eq.s32.totalorder %s22, 3
      %p166 = por %p164, %p165
      %p167 = scmp.ne.s32.totalorder %s158, %s159
      %p168 = scmp.eq.s32.totalorder %s22, 0
      %p169 = por %p167, %p168
      %p170 = scmp.ne.s32.totalorder %s158, %s159
      %p171 = scmp.eq.s32.totalorder %s23, 3
      %p172 = por %p170, %p171
      %p174 = scmp.ne.s32.totalorder %s159, %s173
      %p175 = scmp.eq.s32.totalorder %s23, 0
      %p176 = por %p174, %p175
      %s177 = ssub.s32 %s17, %s24
      %p178 = scmp.eq.s32.totalorder %s177, 0
      %s180 = sadd.s32 %s179, 1
      %s181 = scalar_select %p178, %s179, %s180
      %p184 = pneg %p178
      %p185 = scmp.eq.s32.totalorder %s17, 3
      %p186 = por %p184, %p185
      %p187 = scmp.ne.s32.totalorder %s179, %s182
      %p188 = scmp.eq.s32.totalorder %s17, 0
      %p189 = por %p187, %p188
      %p190 = scmp.ne.s32.totalorder %s179, %s182
      %p191 = scmp.eq.s32.totalorder %s22, 3
      %p192 = por %p190, %p191
      %p193 = scmp.ne.s32.totalorder %s182, %s183
      %p194 = scmp.eq.s32.totalorder %s22, 0
      %p195 = por %p193, %p194
      %p196 = scmp.ne.s32.totalorder %s182, %s183
      %p197 = scmp.eq.s32.totalorder %s23, 3
      %p198 = por %p196, %p197
      %p200 = scmp.ne.s32.totalorder %s183, %s199
      %p201 = scmp.eq.s32.totalorder %s23, 0
      %p202 = por %p200, %p201
      %p203 = scmp.le.s32.totalorder 1, %s17
      %p204 = scmp.lt.s32.totalorder %s17, 5
      %p205 = pnand %p203, %p204
      %p206 = pneg %p205
      // Predicated region
      $region9: #{tpu_custom_call.1} parent=5 // pred_check
        _
      $region10: #{tpu_custom_call.1} parent=5 // pred_check_branch
        %208 = sbr.rel (%p205) target = $region12
      $region11: #{tpu_custom_call.1} parent=5 // pred_region
        %s209 = ssub.s32 %s17, 1
        // Predicated region
        $region13: #{tpu_custom_call.1} parent=11 // pred_check
          %p210 = pneg %p64
        $region14: #{tpu_custom_call.1} parent=11 // pred_check_branch
          %212 = sbr.rel (%p210) target = $region16
        $region15: #{tpu_custom_call.1} parent=11 // pred_region
          _
        $region16: #{tpu_custom_call.1} parent=11 // pred_fallthru
          _
        // Predicated region
        $region17: #{tpu_custom_call.1} parent=11 // pred_check
          %p213 = pneg %p85
        $region18: #{tpu_custom_call.1} parent=11 // pred_check_branch
          %215 = sbr.rel (%p213) target = $region20
        $region19: #{tpu_custom_call.1} parent=11 // pred_region
          _
        $region20: #{tpu_custom_call.1} parent=11 // pred_fallthru
          _
        // Predicated region
        $region21: #{tpu_custom_call.1} parent=11 // pred_check
          %p216 = pneg %p106
        $region22: #{tpu_custom_call.1} parent=11 // pred_check_branch
          %218 = sbr.rel (%p216) target = $region24
        $region23: #{tpu_custom_call.1} parent=11 // pred_region
          %s220 = ssub.s32 512, 512
          %221 = vsyncadd [#allocation3], %s220
          %s222 = sshll.u32 [#allocation2], 4
          %s223 = int_to_ptr.vmem [resolvable:$true] %s222
          %228 = dma.hbm_to_vmem [thread:$0]  %s3, 512, %s223, [#allocation3], 128, 128, 8
        $region24: #{tpu_custom_call.1} parent=11 // pred_fallthru
          _
        // Predicated region
        $region25: #{tpu_custom_call.1} parent=11 // pred_check
          %p229 = pneg %p127
        $region26: #{tpu_custom_call.1} parent=11 // pred_check_branch
          %231 = sbr.rel (%p229) target = $region28
        $region27: #{tpu_custom_call.1} parent=11 // pred_region
          _
        $region28: #{tpu_custom_call.1} parent=11 // pred_fallthru
          _
        // Predicated region
        $region29: #{tpu_custom_call.1} parent=11 // pred_check
          %p232 = pneg %p148
        $region30: #{tpu_custom_call.1} parent=11 // pred_check_branch
          %234 = sbr.rel (%p232) target = $region32
        $region31: #{tpu_custom_call.1} parent=11 // pred_region
          _
        $region32: #{tpu_custom_call.1} parent=11 // pred_fallthru
          _
        // Predicated region
        $region33: #{tpu_custom_call.1} parent=11 // pred_check
          %p235 = pneg %p169
        $region34: #{tpu_custom_call.1} parent=11 // pred_check_branch
          %237 = sbr.rel (%p235) target = $region36
        $region35: #{tpu_custom_call.1} parent=11 // pred_region
          _
        $region36: #{tpu_custom_call.1} parent=11 // pred_fallthru
          _
      $region12: #{tpu_custom_call.1} parent=5 // pred_fallthru
        _
      %p238 = scmp.lt.s32.totalorder %s17, 4
      // Predicated region
      $region37: #{tpu_custom_call.1} parent=5 // pred_check
        %p239 = pneg %p238
      $region38: #{tpu_custom_call.1} parent=5 // pred_check_branch
        %241 = sbr.rel (%p239) target = $region40
      $region39: #{tpu_custom_call.1} parent=5 // pred_region
        // Predicated region
        $region41: #{tpu_custom_call.1} parent=39 // pred_check
          %p242 = pneg %p37
        $region42: #{tpu_custom_call.1} parent=39 // pred_check_branch
          %244 = sbr.rel (%p242) target = $region44
        $region43: #{tpu_custom_call.1} parent=39 // pred_region
          %s245 = smul.u32 2, %s17
          %p246 = scmp.lt.s32.totalorder %s245, 7
          %s247 = scalar_select %p246, %s245, 7
          %s248 = smul.addr %s247, 8
          %s249 = scalar_lea.vmem %s0, %s248
          %s250 = smul.u32 2, %s17
        $region44: #{tpu_custom_call.1} parent=39 // pred_fallthru
          _
      $region40: #{tpu_custom_call.1} parent=5 // pred_fallthru
        _
      %p251 = scmp.le.s32.totalorder 1, %s17
      %p252 = scmp.lt.s32.totalorder %s17, 5
      %p253 = pnand %p251, %p252
      %p254 = pneg %p253
      // Predicated region
      $region45: #{tpu_custom_call.1} parent=5 // pred_check
        _
      $region46: #{tpu_custom_call.1} parent=5 // pred_check_branch
        %256 = sbr.rel (%p253) target = $region48
      $region47: #{tpu_custom_call.1} parent=5 // pred_region
        %s257 = ssub.s32 %s17, 1
        // Predicated region
        $region49: #{tpu_custom_call.1} parent=47 // pred_check
          %p258 = pneg %p106
        $region50: #{tpu_custom_call.1} parent=47 // pred_check_branch
          %260 = sbr.rel (%p258) target = $region52
        $region51: #{tpu_custom_call.1} parent=47 // pred_region
          %261 = dma.done [#allocation3], 512
        $region52: #{tpu_custom_call.1} parent=47 // pred_fallthru
          _
        %s262 = smul.u32 2, %s22
        %p263 = scmp.lt.s32.totalorder %s262, 7
        %s264 = scalar_select %p263, %s262, 7
        %s265 = smul.addr %s264, 8
        %s266 = scalar_lea.vmem %s0, %s265
        %p267 = pneg %p43
        %p268 = pneg %p40
        %p269 = pneg %p64
        %p270 = pneg %p61
        %p271 = pneg %p85
        %p272 = pneg %p82
        %p273 = pneg %p106
        %p274 = pneg %p103
        %p275 = pneg %p127
        %p276 = pneg %p124
        %p277 = pneg %p148
        %p278 = pneg %p145
        %p279 = pneg %p169
        %p280 = pneg %p166
        %p281 = pneg %p195
        %p282 = pneg %p192
        %s283 = sand.u32 %s182, 1
        %s284 = scalar_lea.sflag [#allocation4], %s283
        %s285 = sand.u32 %s182, 1
        %s286 = smul.addr %s285, 8
        %s287 = scalar_lea.vmem [#allocation5], %s286
        %s288 = smul.u32 2, %s22
        %p289 = scmp.lt.s32.totalorder %s288, 7
        %s290 = scalar_select %p289, %s288, 7
        %s291 = smul.addr %s290, 8
        %s292 = scalar_lea.vmem %s0, %s291
        %s293 = smul.u32 2, %s22
        %s294 = smul.u32 2, %s22
        %v295 = vld [vmem:[%s292] sm:$0xff]
        %v296 = vld [vmem:[%s292 + $0x8] sm:$0xff]
        %v297 = vld [vmem:[%s1] sm:$0xff]
        %v298 = vld [vmem:[%s2] sm:$0x1]
        %v300 = vlaneseq
        %v301 = vshrl.u32 %v300, 7
        %v302 = vsub.s32 0, %v301
        %v303 = vrot.slane %v298, %v302
        %vm305 = vcmask 64512
        %v307 = vsel %vm305, %v295, 0
        %v310 = vsel %vm305, %v296, 0
        %312 = vmatprep.subr.mxu0 0.0
        %313 = vmatpush1.msra.mxu0 0.0
        %314 = vmatprep.subr.mxu0 0.0
        %315 = vmatpush1.msra.mxu0 0.0
        %316 = vmatprep.subr.mxu0 0.0
        %317 = vmatpush1.msra.mxu0 0.0
        %318 = vmatprep.subr.mxu0 0.0
        %319 = vmatpush1.msra.mxu0 0.0
        %320 = vmatprep.subr.mxu0 0.0
        %321 = vmatpush1.msra.mxu0 0.0
        %322 = vmatprep.subr.mxu0 0.0
        %323 = vmatpush1.msra.mxu0 0.0
        %324 = vmatprep.subr.mxu0 0.0
        %325 = vmatpush1.msra.mxu0 0.0
        %326 = vmatprep.subr.mxu0 0.0
        %327 = vmatpush1.msra.mxu0 0.0
        %328 = vmatprep.subr.mxu0 0.0
        %329 = vmatpush1.msra.mxu0 0.0
        %330 = vmatprep.subr.mxu0 0.0
        %331 = vmatpush1.msra.mxu0 0.0
        %332 = vmatprep.subr.mxu0 0.0
        %333 = vmatpush1.msra.mxu0 0.0
        %334 = vmatprep.subr.mxu0 0.0
        %335 = vmatpush1.msra.mxu0 0.0
        %336 = vmatprep.subr.mxu0 0.0
        %337 = vmatpush1.msra.mxu0 0.0
        %338 = vmatprep.subr.mxu0 0.0
        %339 = vmatpush1.msra.mxu0 0.0
        %340 = vmatprep.subr.mxu0 0.0
        %341 = vmatpush1.msra.mxu0 0.0
        %342 = vmatprep.subr.mxu0 0.0
        %343 = vmatpush1.msra.mxu0 %v297
        %344 = vmatprep.subr.mxu0 0.0
        %345 = vmatpush2.msra.mxu0 0.0
        %346 = vmatprep.subr.mxu0 0.0
        %347 = vmatpush2.msra.mxu0 0.0
        %348 = vmatprep.subr.mxu0 0.0
        %349 = vmatpush2.msra.mxu0 0.0
        %350 = vmatprep.subr.mxu0 0.0
        %351 = vmatpush2.msra.mxu0 0.0
        %352 = vmatprep.subr.mxu0 0.0
        %353 = vmatpush2.msra.mxu0 0.0
        %354 = vmatprep.subr.mxu0 0.0
        %355 = vmatpush2.msra.mxu0 0.0
        %356 = vmatprep.subr.mxu0 0.0
        %357 = vmatpush2.msra.mxu0 0.0
        %358 = vmatprep.subr.mxu0 0.0
        %359 = vmatpush2.msra.mxu0 0.0
        %360 = vmatprep.subr.mxu0 0.0
        %361 = vmatpush2.msra.mxu0 0.0
        %362 = vmatprep.subr.mxu0 0.0
        %363 = vmatpush2.msra.mxu0 0.0
        %364 = vmatprep.subr.mxu0 0.0
        %365 = vmatpush2.msra.mxu0 0.0
        %366 = vmatprep.subr.mxu0 0.0
        %367 = vmatpush2.msra.mxu0 0.0
        %368 = vmatprep.subr.mxu0 0.0
        %369 = vmatpush2.msra.mxu0 0.0
        %370 = vmatprep.subr.mxu0 0.0
        %371 = vmatpush2.msra.mxu0 0.0
        %372 = vmatprep.subr.mxu0 0.0
        %373 = vmatpush2.msra.mxu0 0.0
        %374 = vmatprep.subr.mxu0 0.0
        %375 = vmatpush2.msra.mxu0 0.0
        %376 = vmatprep.mubr.f32.mxu0 0.0
        %377 = vmatmul.mubr.f32.gmra.mxu0 %v307
        %v378 = vpop.f32.mrf.mxu0
        %v379 = vadd.f32 %v303, %v378
        %v380 = vpop.f32.mrf.mxu0
        %381 = vmatprep.mubr.f32.mxu0 0.0
        %382 = vmatmul.mubr.f32.gmra.mxu0 %v310
        %v383 = vpop.f32.mrf.mxu0
        %v384 = vadd.f32 %v303, %v383
        %v385 = vpop.f32.mrf.mxu0
        %386 = vdwg.mxu0
        %v387 = vmax.f32 %v379, 0.0
        %v388 = vmax.f32 %v384, 0.0
        %v389 = vld [vmem:[#allocation2] sm:$0xff]
        %v390 = vld [vmem:[#allocation2 + $0x8] sm:$0xff]
        %v391 = vld [vmem:[#allocation2 + $0x10] sm:$0xff]
        %v392 = vld [vmem:[#allocation2 + $0x18] sm:$0xff]
        %v393 = vld [vmem:[%s4] sm:$0x1]
        %v395 = vlaneseq
        %v396 = vshrl.u32 %v395, 7
        %v397 = vsub.s32 0, %v396
        %v398 = vrot.slane %v393, %v397
        %vm400 = vcmask 261120
        %v402 = vsel %vm400, %v387, 0
        %v405 = vsel %vm400, %v388, 0
        %407 = vmatprep.subr.mxu0 0.0
        %408 = vmatpush1.msra.mxu0 0.0
        %409 = vmatprep.subr.mxu0 0.0
        %410 = vmatpush1.msra.mxu0 0.0
        %411 = vmatprep.subr.mxu0 0.0
        %412 = vmatpush1.msra.mxu0 0.0
        %413 = vmatprep.subr.mxu0 0.0
        %414 = vmatpush1.msra.mxu0 0.0
        %415 = vmatprep.subr.mxu0 0.0
        %416 = vmatpush1.msra.mxu0 0.0
        %417 = vmatprep.subr.mxu0 0.0
        %418 = vmatpush1.msra.mxu0 0.0
        %419 = vmatprep.subr.mxu0 0.0
        %420 = vmatpush1.msra.mxu0 0.0
        %421 = vmatprep.subr.mxu0 0.0
        %422 = vmatpush1.msra.mxu0 0.0
        %423 = vmatprep.subr.mxu0 0.0
        %424 = vmatpush1.msra.mxu0 0.0
        %425 = vmatprep.subr.mxu0 0.0
        %426 = vmatpush1.msra.mxu0 0.0
        %427 = vmatprep.subr.mxu0 0.0
        %428 = vmatpush1.msra.mxu0 0.0
        %429 = vmatprep.subr.mxu0 0.0
        %430 = vmatpush1.msra.mxu0 0.0
        %431 = vmatprep.subr.mxu0 0.0
        %432 = vmatpush1.msra.mxu0 %v392
        %433 = vmatprep.subr.mxu0 0.0
        %434 = vmatpush1.msra.mxu0 %v391
        %435 = vmatprep.subr.mxu0 0.0
        %436 = vmatpush1.msra.mxu0 %v390
        %437 = vmatprep.subr.mxu0 0.0
        %438 = vmatpush1.msra.mxu0 %v389
        %439 = vmatprep.subr.mxu0 0.0
        %440 = vmatpush2.msra.mxu0 0.0
        %441 = vmatprep.subr.mxu0 0.0
        %442 = vmatpush2.msra.mxu0 0.0
        %443 = vmatprep.subr.mxu0 0.0
        %444 = vmatpush2.msra.mxu0 0.0
        %445 = vmatprep.subr.mxu0 0.0
        %446 = vmatpush2.msra.mxu0 0.0
        %447 = vmatprep.subr.mxu0 0.0
        %448 = vmatpush2.msra.mxu0 0.0
        %449 = vmatprep.subr.mxu0 0.0
        %450 = vmatpush2.msra.mxu0 0.0
        %451 = vmatprep.subr.mxu0 0.0
        %452 = vmatpush2.msra.mxu0 0.0
        %453 = vmatprep.subr.mxu0 0.0
        %454 = vmatpush2.msra.mxu0 0.0
        %455 = vmatprep.subr.mxu0 0.0
        %456 = vmatpush2.msra.mxu0 0.0
        %457 = vmatprep.subr.mxu0 0.0
        %458 = vmatpush2.msra.mxu0 0.0
        %459 = vmatprep.subr.mxu0 0.0
        %460 = vmatpush2.msra.mxu0 0.0
        %461 = vmatprep.subr.mxu0 0.0
        %462 = vmatpush2.msra.mxu0 0.0
        %463 = vmatprep.subr.mxu0 0.0
        %464 = vmatpush2.msra.mxu0 0.0
        %465 = vmatprep.subr.mxu0 0.0
        %466 = vmatpush2.msra.mxu0 0.0
        %467 = vmatprep.subr.mxu0 0.0
        %468 = vmatpush2.msra.mxu0 0.0
        %469 = vmatprep.subr.mxu0 0.0
        %470 = vmatpush2.msra.mxu0 0.0
        %471 = vmatprep.mubr.f32.mxu0 0.0
        %472 = vmatmul.mubr.f32.gmra.mxu0 %v402
        %v473 = vpop.f32.mrf.mxu0
        %v474 = vadd.f32 %v398, %v473
        %v475 = vpop.f32.mrf.mxu0
        %476 = vmatprep.mubr.f32.mxu0 0.0
        %477 = vmatmul.mubr.f32.gmra.mxu0 %v405
        %v478 = vpop.f32.mrf.mxu0
        %v479 = vadd.f32 %v398, %v478
        %v480 = vpop.f32.mrf.mxu0
        %481 = vdwg.mxu0
        %v482 = vmax.f32 %v474, 0.0
        %v483 = vmax.f32 %v479, 0.0
        %v484 = vld [vmem:[%s5] sm:$0xff]
        %v485 = vld [vmem:[%s5 + $0x8] sm:$0xff]
        %v486 = vld [vmem:[%s5 + $0x10] sm:$0xff]
        %v487 = vld [vmem:[%s5 + $0x18] sm:$0xff]
        %v488 = vld [vmem:[%s5 + $0x20] sm:$0xff]
        %v489 = vld [vmem:[%s5 + $0x28] sm:$0xff]
        %v490 = vld [vmem:[%s5 + $0x30] sm:$0xff]
        %v491 = vld [vmem:[%s5 + $0x38] sm:$0xff]
        %v492 = vld [vmem:[%s6] sm:$0x1]
        %v494 = vlaneseq
        %v495 = vshrl.u32 %v494, 7
        %v496 = vsub.s32 0, %v495
        %v497 = vrot.slane %v492, %v496
        %vm499 = vcmask 523264
        %v501 = vsel %vm499, %v482, 0
        %v504 = vsel %vm499, %v483, 0
        %506 = vmatprep.subr.mxu0 0.0
        %507 = vmatpush1.msra.mxu0 0.0
        %508 = vmatprep.subr.mxu0 0.0
        %509 = vmatpush1.msra.mxu0 0.0
        %510 = vmatprep.subr.mxu0 0.0
        %511 = vmatpush1.msra.mxu0 0.0
        %512 = vmatprep.subr.mxu0 0.0
        %513 = vmatpush1.msra.mxu0 0.0
        %514 = vmatprep.subr.mxu0 0.0
        %515 = vmatpush1.msra.mxu0 0.0
        %516 = vmatprep.subr.mxu0 0.0
        %517 = vmatpush1.msra.mxu0 0.0
        %518 = vmatprep.subr.mxu0 0.0
        %519 = vmatpush1.msra.mxu0 0.0
        %520 = vmatprep.subr.mxu0 0.0
        %521 = vmatpush1.msra.mxu0 0.0
        %522 = vmatprep.subr.mxu0 0.0
        %523 = vmatpush1.msra.mxu0 %v491
        %524 = vmatprep.subr.mxu0 0.0
        %525 = vmatpush1.msra.mxu0 %v490
        %526 = vmatprep.subr.mxu0 0.0
        %527 = vmatpush1.msra.mxu0 %v489
        %528 = vmatprep.subr.mxu0 0.0
        %529 = vmatpush1.msra.mxu0 %v488
        %530 = vmatprep.subr.mxu0 0.0
        %531 = vmatpush1.msra.mxu0 %v487
        %532 = vmatprep.subr.mxu0 0.0
        %533 = vmatpush1.msra.mxu0 %v486
        %534 = vmatprep.subr.mxu0 0.0
        %535 = vmatpush1.msra.mxu0 %v485
        %536 = vmatprep.subr.mxu0 0.0
        %537 = vmatpush1.msra.mxu0 %v484
        %538 = vmatprep.subr.mxu0 0.0
        %539 = vmatpush2.msra.mxu0 0.0
        %540 = vmatprep.subr.mxu0 0.0
        %541 = vmatpush2.msra.mxu0 0.0
        %542 = vmatprep.subr.mxu0 0.0
        %543 = vmatpush2.msra.mxu0 0.0
        %544 = vmatprep.subr.mxu0 0.0
        %545 = vmatpush2.msra.mxu0 0.0
        %546 = vmatprep.subr.mxu0 0.0
        %547 = vmatpush2.msra.mxu0 0.0
        %548 = vmatprep.subr.mxu0 0.0
        %549 = vmatpush2.msra.mxu0 0.0
        %550 = vmatprep.subr.mxu0 0.0
        %551 = vmatpush2.msra.mxu0 0.0
        %552 = vmatprep.subr.mxu0 0.0
        %553 = vmatpush2.msra.mxu0 0.0
        %554 = vmatprep.subr.mxu0 0.0
        %555 = vmatpush2.msra.mxu0 0.0
        %556 = vmatprep.subr.mxu0 0.0
        %557 = vmatpush2.msra.mxu0 0.0
        %558 = vmatprep.subr.mxu0 0.0
        %559 = vmatpush2.msra.mxu0 0.0
        %560 = vmatprep.subr.mxu0 0.0
        %561 = vmatpush2.msra.mxu0 0.0
        %562 = vmatprep.subr.mxu0 0.0
        %563 = vmatpush2.msra.mxu0 0.0
        %564 = vmatprep.subr.mxu0 0.0
        %565 = vmatpush2.msra.mxu0 0.0
        %566 = vmatprep.subr.mxu0 0.0
        %567 = vmatpush2.msra.mxu0 0.0
        %568 = vmatprep.subr.mxu0 0.0
        %569 = vmatpush2.msra.mxu0 0.0
        %570 = vmatprep.mubr.f32.mxu0 0.0
        %571 = vmatmul.mubr.f32.gmra.mxu0 %v501
        %v572 = vpop.f32.mrf.mxu0
        %v573 = vadd.f32 %v497, %v572
        %v574 = vpop.f32.mrf.mxu0
        %575 = vmatprep.mubr.f32.mxu0 0.0
        %576 = vmatmul.mubr.f32.gmra.mxu0 %v504
        %v577 = vpop.f32.mrf.mxu0
        %v578 = vadd.f32 %v497, %v577
        %v579 = vpop.f32.mrf.mxu0
        %580 = vdwg.mxu0
        %v581 = vmax.f32 %v573, 0.0
        %v582 = vmax.f32 %v578, 0.0
        %v583 = vpack.c.bf16 %v582, %v581
        %v585 = vunpack.c.l.b16 %v583
        %v586 = vunpack.c.h.b16 %v583
        %v587 = vpack.c.b16 %v585, %v585
        %v588 = vpack.c.b16 %v586, %v586
        %591 = vst [vmem:[%s287] sm:$0xf] %v587
        %592 = vst [vmem:[%s287 + $0x4] sm:$0xf] %v588
        %s593 = sand.u32 %s182, 1
        %s594 = scalar_lea.sflag [#allocation4], %s593
        %s595 = sand.u32 %s182, 1
        %s596 = smul.addr %s595, 8
        %s597 = scalar_lea.vmem [#allocation5], %s596
        // Predicated region
        $region53: #{tpu_custom_call.1} parent=47 // pred_check
          %p598 = pneg %p192
        $region54: #{tpu_custom_call.1} parent=47 // pred_check_branch
          %600 = sbr.rel (%p598) target = $region56
        $region55: #{tpu_custom_call.1} parent=47 // pred_region
          %s601 = smul.u32 2, %s22
          %s603 = ssub.s32 128, 128
          %604 = vsyncadd %s594, %s603
          %s605 = smul.addr %s601, 64
          %s606 = scalar_lea.hbm %s7, %s605
          %s607 = sshll.u32 %s597, 4
          %s608 = int_to_ptr.vmem [resolvable:$true] %s607
          %613 = dma.vmem_to_hbm [thread:$0]  %s608, 128, %s606, %s594, 64, 64, 4
        $region56: #{tpu_custom_call.1} parent=47 // pred_fallthru
          _
      $region48: #{tpu_custom_call.1} parent=5 // pred_fallthru
        _
      %p614 = scmp.le.s32.totalorder 2, %s17
      // Predicated region
      $region57: #{tpu_custom_call.1} parent=5 // pred_check
        %p615 = pneg %p614
      $region58: #{tpu_custom_call.1} parent=5 // pred_check_branch
        %617 = sbr.rel (%p615) target = $region60
      $region59: #{tpu_custom_call.1} parent=5 // pred_region
        %s618 = ssub.s32 %s17, 2
        // Predicated region
        $region61: #{tpu_custom_call.1} parent=59 // pred_check
          %p619 = pneg %p198
        $region62: #{tpu_custom_call.1} parent=59 // pred_check_branch
          %621 = sbr.rel (%p619) target = $region64
        $region63: #{tpu_custom_call.1} parent=59 // pred_region
          %s622 = sand.u32 %s183, 1
          %s623 = scalar_lea.sflag [#allocation4], %s622
          %s624 = sand.u32 %s183, 1
          %s625 = smul.addr %s624, 8
          %s626 = scalar_lea.vmem [#allocation5], %s625
          %627 = dma.done %s623, 128
        $region64: #{tpu_custom_call.1} parent=59 // pred_fallthru
          _
      $region60: #{tpu_custom_call.1} parent=5 // pred_fallthru
        _
    $region6: #{tpu_custom_call.1} parent=1 // loop_footer
      %s21 = sadd.s32 1, %s17
    $region7: #{tpu_custom_call.1} parent=1 // loop_footer_branch
      %16 = sbr.rel target = $region3
    $region8: #{tpu_custom_call.1} parent=1 // loop_exit
      _
    %628 = vsyncpa [#allocation3], 1
    %s629 = scalar_lea.sflag [#allocation3], 1
    %630 = vsyncpa %s629, 1
    %631 = vsyncpa [#allocation4], 1
    %s632 = scalar_lea.sflag [#allocation4], 1
    %633 = vsyncpa %s632, 1

// kernel: tpu_custom_call.1
$region0: #{tpu_custom_call.1}
  #allocation0 [shape = 'u32[]', space=smem, size = 0x4, offset = 0x4, fixed_abs, tag = 'smem constant byte address 0x4 - core index']
  #allocation1 [shape = 'u32[144,128]{1,0:T(1,128)}', space=vmem, size = 0x12000, scoped, tag = 'internal scratch']
  %s0 = inlined_call_operand.vmem [shape: f32[64,8], index: 0, kind: input, shape index: {}]
  %s1 = inlined_call_operand.vmem [shape: f32[8,32], index: 1, kind: input, shape index: {}]
  %s2 = inlined_call_operand.vmem [shape: f32[1,32], index: 2, kind: input, shape index: {}]
  %s3 = inlined_call_operand.hbm [shape: f32[32,64], index: 3, kind: input, shape index: {}]
  %s4 = inlined_call_operand.vmem [shape: f32[1,64], index: 4, kind: input, shape index: {}]
  %s5 = inlined_call_operand.vmem [shape: f32[64,128], index: 5, kind: input, shape index: {}]
  %s6 = inlined_call_operand.vmem [shape: f32[1,128], index: 6, kind: input, shape index: {}]
  %s7 = inlined_call_operand.hbm [shape: bf16[64,128], index: 7, kind: output, shape index: {}]
  %s8 = sld [smem:[#allocation0]]
  $region65: #{tpu_custom_call.1} parent=0
    _
  %s10 = ssub.s32 1, %s8
  %s11 = scalar_select 0, %s10, %s8
  $region1: #{tpu_custom_call.1} parent=0
    #allocation2 [shape = 'u8[16384]{0}', space=vmem, size = 0x4000, scoped, tag = 'input window, operand 3, single buffered']
    #allocation3 [shape = 's32[2]{0}', space=sflag, size = 0x8, scoped, tag = 'scoped memory for tpu_custom_call.1']
    #allocation4 [shape = 's32[2]{0}', space=sflag, size = 0x8, scoped, tag = 'scoped memory for tpu_custom_call.1']
    #allocation5 [shape = 'u8[8192]{0}', space=vmem, size = 0x2000, scoped, tag = 'output window, operand 0']
    %12 = vsyncpa [#allocation3], 0
    %13 = vsyncpa [#allocation4], 0
    %s14 = scalar_lea.sflag [#allocation4], 1
    %15 = vsyncpa %s14, 0
    loop: start=0, step=1, limit=6
    $region2: #{tpu_custom_call.1} parent=1 // loop_pre_header
      _
    $region3: #{tpu_custom_call.1} parent=1 // loop_header
      %s17 = sphi 0, %s21
      %p18 = scmp.ge.s32.totalorder %s17, 6
      %s27 = sphi 0, %s29
      %s30 = sphi 0, %s27
      %s31 = sphi 0, %s30
      %s47 = sphi 0, %s31
      %s51 = sphi 0, %s51
      %s53 = sphi 0, %s51
      %s54 = sphi 0, %s53
      %s68 = sphi 0, %s54
      %s72 = sphi 0, %s72
      %s74 = sphi 0, %s72
      %s75 = sphi 0, %s74
      %s89 = sphi 0, %s75
      %s93 = sphi 0, %s93
      %s95 = sphi 0, %s93
      %s96 = sphi 0, %s95
      %s110 = sphi 0, %s96
      %s114 = sphi 0, %s114
      %s116 = sphi 0, %s114
      %s117 = sphi 0, %s116
      %s131 = sphi 0, %s117
      %s135 = sphi 0, %s135
      %s137 = sphi 0, %s135
      %s138 = sphi 0, %s137
      %s152 = sphi 0, %s138
      %s156 = sphi 0, %s156
      %s158 = sphi 0, %s156
      %s159 = sphi 0, %s158
      %s173 = sphi 0, %s159
      %s179 = sphi 0, %s181
      %s182 = sphi 0, %s179
      %s183 = sphi 0, %s182
      %s199 = sphi 0, %s183
    $region4: #{tpu_custom_call.1} parent=1 // loop_header_branch
      %20 = sbr.rel (%p18) target = $region8
    $region5: #{tpu_custom_call.1} parent=1 // loop_body
      %s22 = ssub.s32 %s17, 1
      %s23 = ssub.s32 %s17, 2
      %s24 = sadd.s32 %s17, 1
      %s25 = ssub.s32 %s17, %s24
      %p26 = scmp.eq.s32.totalorder %s25, 0
      %s28 = sadd.s32 %s27, 1
      %s29 = scalar_select %p26, %s27, %s28
      %p32 = pneg %p26
      %p33 = scmp.eq.s32.totalorder %s17, 3
      %p34 = por %p32, %p33
      %p35 = scmp.ne.s32.totalorder %s27, %s30
      %p36 = scmp.eq.s32.totalorder %s17, 0
      %p37 = por %p35, %p36
      %p38 = scmp.ne.s32.totalorder %s27, %s30
      %p39 = scmp.eq.s32.totalorder %s22, 3
      %p40 = por %p38, %p39
      %p41 = scmp.ne.s32.totalorder %s30, %s31
      %p42 = scmp.eq.s32.totalorder %s22, 0
      %p43 = por %p41, %p42
      %p44 = scmp.ne.s32.totalorder %s30, %s31
      %p45 = scmp.eq.s32.totalorder %s23, 3
      %p46 = por %p44, %p45
      %p48 = scmp.ne.s32.totalorder %s31, %s47
      %p49 = scmp.eq.s32.totalorder %s23, 0
      %p50 = por %p48, %p49
      %s52 = sadd.s32 %s51, 1
      %p55 = scmp.eq.s32.totalorder %s17, 3
      %p56 = scmp.ne.s32.totalorder %s51, %s53
      %p57 = scmp.eq.s32.totalorder %s17, 0
      %p58 = por %p56, %p57
      %p59 = scmp.ne.s32.totalorder %s51, %s53
      %p60 = scmp.eq.s32.totalorder %s22, 3
      %p61 = por %p59, %p60
      %p62 = scmp.ne.s32.totalorder %s53, %s54
      %p63 = scmp.eq.s32.totalorder %s22, 0
      %p64 = por %p62, %p63
      %p65 = scmp.ne.s32.totalorder %s53, %s54
      %p66 = scmp.eq.s32.totalorder %s23, 3
      %p67 = por %p65, %p66
      %p69 = scmp.ne.s32.totalorder %s54, %s68
      %p70 = scmp.eq.s32.totalorder %s23, 0
      %p71 = por %p69, %p70
      %s73 = sadd.s32 %s72, 1
      %p76 = scmp.eq.s32.totalorder %s17, 3
      %p77 = scmp.ne.s32.totalorder %s72, %s74
      %p78 = scmp.eq.s32.totalorder %s17, 0
      %p79 = por %p77, %p78
      %p80 = scmp.ne.s32.totalorder %s72, %s74
      %p81 = scmp.eq.s32.totalorder %s22, 3
      %p82 = por %p80, %p81
      %p83 = scmp.ne.s32.totalorder %s74, %s75
      %p84 = scmp.eq.s32.totalorder %s22, 0
      %p85 = por %p83, %p84
      %p86 = scmp.ne.s32.totalorder %s74, %s75
      %p87 = scmp.eq.s32.totalorder %s23, 3
      %p88 = por %p86, %p87
      %p90 = scmp.ne.s32.totalorder %s75, %s89
      %p91 = scmp.eq.s32.totalorder %s23, 0
      %p92 = por %p90, %p91
      %s94 = sadd.s32 %s93, 1
      %p97 = scmp.eq.s32.totalorder %s17, 3
      %p98 = scmp.ne.s32.totalorder %s93, %s95
      %p99 = scmp.eq.s32.totalorder %s17, 0
      %p100 = por %p98, %p99
      %p101 = scmp.ne.s32.totalorder %s93, %s95
      %p102 = scmp.eq.s32.totalorder %s22, 3
      %p103 = por %p101, %p102
      %p104 = scmp.ne.s32.totalorder %s95, %s96
      %p105 = scmp.eq.s32.totalorder %s22, 0
      %p106 = por %p104, %p105
      %p107 = scmp.ne.s32.totalorder %s95, %s96
      %p108 = scmp.eq.s32.totalorder %s23, 3
      %p109 = por %p107, %p108
      %p111 = scmp.ne.s32.totalorder %s96, %s110
      %p112 = scmp.eq.s32.totalorder %s23, 0
      %p113 = por %p111, %p112
      %s115 = sadd.s32 %s114, 1
      %p118 = scmp.eq.s32.totalorder %s17, 3
      %p119 = scmp.ne.s32.totalorder %s114, %s116
      %p120 = scmp.eq.s32.totalorder %s17, 0
      %p121 = por %p119, %p120
      %p122 = scmp.ne.s32.totalorder %s114, %s116
      %p123 = scmp.eq.s32.totalorder %s22, 3
      %p124 = por %p122, %p123
      %p125 = scmp.ne.s32.totalorder %s116, %s117
      %p126 = scmp.eq.s32.totalorder %s22, 0
      %p127 = por %p125, %p126
      %p128 = scmp.ne.s32.totalorder %s116, %s117
      %p129 = scmp.eq.s32.totalorder %s23, 3
      %p130 = por %p128, %p129
      %p132 = scmp.ne.s32.totalorder %s117, %s131
      %p133 = scmp.eq.s32.totalorder %s23, 0
      %p134 = por %p132, %p133
      %s136 = sadd.s32 %s135, 1
      %p139 = scmp.eq.s32.totalorder %s17, 3
      %p140 = scmp.ne.s32.totalorder %s135, %s137
      %p141 = scmp.eq.s32.totalorder %s17, 0
      %p142 = por %p140, %p141
      %p143 = scmp.ne.s32.totalorder %s135, %s137
      %p144 = scmp.eq.s32.totalorder %s22, 3
      %p145 = por %p143, %p144
      %p146 = scmp.ne.s32.totalorder %s137, %s138
      %p147 = scmp.eq.s32.totalorder %s22, 0
      %p148 = por %p146, %p147
      %p149 = scmp.ne.s32.totalorder %s137, %s138
      %p150 = scmp.eq.s32.totalorder %s23, 3
      %p151 = por %p149, %p150
      %p153 = scmp.ne.s32.totalorder %s138, %s152
      %p154 = scmp.eq.s32.totalorder %s23, 0
      %p155 = por %p153, %p154
      %s157 = sadd.s32 %s156, 1
      %p160 = scmp.eq.s32.totalorder %s17, 3
      %p161 = scmp.ne.s32.totalorder %s156, %s158
      %p162 = scmp.eq.s32.totalorder %s17, 0
      %p163 = por %p161, %p162
      %p164 = scmp.ne.s32.totalorder %s156, %s158
      %p165 = scmp.eq.s32.totalorder %s22, 3
      %p166 = por %p164, %p165
      %p167 = scmp.ne.s32.totalorder %s158, %s159
      %p168 = scmp.eq.s32.totalorder %s22, 0
      %p169 = por %p167, %p168
      %p170 = scmp.ne.s32.totalorder %s158, %s159
      %p171 = scmp.eq.s32.totalorder %s23, 3
      %p172 = por %p170, %p171
      %p174 = scmp.ne.s32.totalorder %s159, %s173
      %p175 = scmp.eq.s32.totalorder %s23, 0
      %p176 = por %p174, %p175
      %s177 = ssub.s32 %s17, %s24
      %p178 = scmp.eq.s32.totalorder %s177, 0
      %s180 = sadd.s32 %s179, 1
      %s181 = scalar_select %p178, %s179, %s180
      %p184 = pneg %p178
      %p185 = scmp.eq.s32.totalorder %s17, 3
      %p186 = por %p184, %p185
      %p187 = scmp.ne.s32.totalorder %s179, %s182
      %p188 = scmp.eq.s32.totalorder %s17, 0
      %p189 = por %p187, %p188
      %p190 = scmp.ne.s32.totalorder %s179, %s182
      %p191 = scmp.eq.s32.totalorder %s22, 3
      %p192 = por %p190, %p191
      %p193 = scmp.ne.s32.totalorder %s182, %s183
      %p194 = scmp.eq.s32.totalorder %s22, 0
      %p195 = por %p193, %p194
      %p196 = scmp.ne.s32.totalorder %s182, %s183
      %p197 = scmp.eq.s32.totalorder %s23, 3
      %p198 = por %p196, %p197
      %p200 = scmp.ne.s32.totalorder %s183, %s199
      %p201 = scmp.eq.s32.totalorder %s23, 0
      %p202 = por %p200, %p201
      %p203 = scmp.le.s32.totalorder 1, %s17
      %p204 = scmp.lt.s32.totalorder %s17, 5
      %p205 = pnand %p203, %p204
      %p206 = pneg %p205
      // Predicated region
      $region9: #{tpu_custom_call.1} parent=5 // pred_check
        _
      $region10: #{tpu_custom_call.1} parent=5 // pred_check_branch
        %208 = sbr.rel (%p205) target = $region12
      $region11: #{tpu_custom_call.1} parent=5 // pred_region
        %s209 = ssub.s32 %s17, 1
        // Predicated region
        $region13: #{tpu_custom_call.1} parent=11 // pred_check
          %p210 = pneg %p64
        $region14: #{tpu_custom_call.1} parent=11 // pred_check_branch
          %212 = sbr.rel (%p210) target = $region16
        $region15: #{tpu_custom_call.1} parent=11 // pred_region
          _
        $region16: #{tpu_custom_call.1} parent=11 // pred_fallthru
          _
        // Predicated region
        $region17: #{tpu_custom_call.1} parent=11 // pred_check
          %p213 = pneg %p85
        $region18: #{tpu_custom_call.1} parent=11 // pred_check_branch
          %215 = sbr.rel (%p213) target = $region20
        $region19: #{tpu_custom_call.1} parent=11 // pred_region
          _
        $region20: #{tpu_custom_call.1} parent=11 // pred_fallthru
          _
        // Predicated region
        $region21: #{tpu_custom_call.1} parent=11 // pred_check
          %p216 = pneg %p106
        $region22: #{tpu_custom_call.1} parent=11 // pred_check_branch
          %218 = sbr.rel (%p216) target = $region24
        $region23: #{tpu_custom_call.1} parent=11 // pred_region
          %s220 = ssub.s32 512, 512
          %221 = vsyncadd [#allocation3], %s220
          %s222 = sshll.u32 [#allocation2], 4
          %s223 = int_to_ptr.vmem [resolvable:$true] %s222
          %228 = dma.hbm_to_vmem [thread:$0]  %s3, 512, %s223, [#allocation3], 128, 128, 8
        $region24: #{tpu_custom_call.1} parent=11 // pred_fallthru
          _
        // Predicated region
        $region25: #{tpu_custom_call.1} parent=11 // pred_check
          %p229 = pneg %p127
        $region26: #{tpu_custom_call.1} parent=11 // pred_check_branch
          %231 = sbr.rel (%p229) target = $region28
        $region27: #{tpu_custom_call.1} parent=11 // pred_region
          _
        $region28: #{tpu_custom_call.1} parent=11 // pred_fallthru
          _
        // Predicated region
        $region29: #{tpu_custom_call.1} parent=11 // pred_check
          %p232 = pneg %p148
        $region30: #{tpu_custom_call.1} parent=11 // pred_check_branch
          %234 = sbr.rel (%p232) target = $region32
        $region31: #{tpu_custom_call.1} parent=11 // pred_region
          _
        $region32: #{tpu_custom_call.1} parent=11 // pred_fallthru
          _
        // Predicated region
        $region33: #{tpu_custom_call.1} parent=11 // pred_check
          %p235 = pneg %p169
        $region34: #{tpu_custom_call.1} parent=11 // pred_check_branch
          %237 = sbr.rel (%p235) target = $region36
        $region35: #{tpu_custom_call.1} parent=11 // pred_region
          _
        $region36: #{tpu_custom_call.1} parent=11 // pred_fallthru
          _
      $region12: #{tpu_custom_call.1} parent=5 // pred_fallthru
        _
      %p238 = scmp.lt.s32.totalorder %s17, 4
      // Predicated region
      $region37: #{tpu_custom_call.1} parent=5 // pred_check
        %p239 = pneg %p238
      $region38: #{tpu_custom_call.1} parent=5 // pred_check_branch
        %241 = sbr.rel (%p239) target = $region40
      $region39: #{tpu_custom_call.1} parent=5 // pred_region
        // Predicated region
        $region41: #{tpu_custom_call.1} parent=39 // pred_check
          %p242 = pneg %p37
        $region42: #{tpu_custom_call.1} parent=39 // pred_check_branch
          %244 = sbr.rel (%p242) target = $region44
        $region43: #{tpu_custom_call.1} parent=39 // pred_region
          %s245 = smul.u32 2, %s17
          %p246 = scmp.lt.s32.totalorder %s245, 7
          %s247 = scalar_select %p246, %s245, 7
          %s248 = smul.addr %s247, 8
          %s249 = scalar_lea.vmem %s0, %s248
          %s250 = smul.u32 2, %s17
        $region44: #{tpu_custom_call.1} parent=39 // pred_fallthru
          _
      $region40: #{tpu_custom_call.1} parent=5 // pred_fallthru
        _
      %p251 = scmp.le.s32.totalorder 1, %s17
      %p252 = scmp.lt.s32.totalorder %s17, 5
      %p253 = pnand %p251, %p252
      %p254 = pneg %p253
      // Predicated region
      $region45: #{tpu_custom_call.1} parent=5 // pred_check
        _
      $region46: #{tpu_custom_call.1} parent=5 // pred_check_branch
        %256 = sbr.rel (%p253) target = $region48
      $region47: #{tpu_custom_call.1} parent=5 // pred_region
        %s257 = ssub.s32 %s17, 1
        // Predicated region
        $region49: #{tpu_custom_call.1} parent=47 // pred_check
          %p258 = pneg %p106
        $region50: #{tpu_custom_call.1} parent=47 // pred_check_branch
          %260 = sbr.rel (%p258) target = $region52
        $region51: #{tpu_custom_call.1} parent=47 // pred_region
          %261 = dma.done [#allocation3], 512
        $region52: #{tpu_custom_call.1} parent=47 // pred_fallthru
          _
        %s262 = smul.u32 2, %s22
        %p263 = scmp.lt.s32.totalorder %s262, 7
        %s264 = scalar_select %p263, %s262, 7
        %s265 = smul.addr %s264, 8
        %s266 = scalar_lea.vmem %s0, %s265
        %p267 = pneg %p43
        %p268 = pneg %p40
        %p269 = pneg %p64
        %p270 = pneg %p61
        %p271 = pneg %p85
        %p272 = pneg %p82
        %p273 = pneg %p106
        %p274 = pneg %p103
        %p275 = pneg %p127
        %p276 = pneg %p124
        %p277 = pneg %p148
        %p278 = pneg %p145
        %p279 = pneg %p169
        %p280 = pneg %p166
        %p281 = pneg %p195
        %p282 = pneg %p192
        %s283 = sand.u32 %s182, 1
        %s284 = scalar_lea.sflag [#allocation4], %s283
        %s285 = sand.u32 %s182, 1
        %s286 = smul.addr %s285, 8
        %s287 = scalar_lea.vmem [#allocation5], %s286
        %s288 = smul.u32 2, %s22
        %p289 = scmp.lt.s32.totalorder %s288, 7
        %s290 = scalar_select %p289, %s288, 7
        %s291 = smul.addr %s290, 8
        %s292 = scalar_lea.vmem %s0, %s291
        %s293 = smul.u32 2, %s22
        %s294 = smul.u32 2, %s22
        %v295 = vld [vmem:[%s292] sm:$0xff]
        %v296 = vld [vmem:[%s292 + $0x8] sm:$0xff]
        %v297 = vld [vmem:[%s1] sm:$0xff]
        %v298 = vld [vmem:[%s2] sm:$0x1]
        %v300 = vlaneseq
        %v301 = vshrl.u32 %v300, 7
        %v302 = vsub.s32 0, %v301
        %v303 = vrot.slane %v298, %v302
        %vm305 = vcmask 64512
        %v307 = vsel %vm305, %v295, 0
        %v310 = vsel %vm305, %v296, 0
        %312 = vmatprep.subr.mxu0 0.0
        %313 = vmatpush1.msra.mxu0 0.0
        %314 = vmatprep.subr.mxu0 0.0
        %315 = vmatpush1.msra.mxu0 0.0
        %316 = vmatprep.subr.mxu0 0.0
        %317 = vmatpush1.msra.mxu0 0.0
        %318 = vmatprep.subr.mxu0 0.0
        %319 = vmatpush1.msra.mxu0 0.0
        %320 = vmatprep.subr.mxu0 0.0
        %321 = vmatpush1.msra.mxu0 0.0
        %322 = vmatprep.subr.mxu0 0.0
        %323 = vmatpush1.msra.mxu0 0.0
        %324 = vmatprep.subr.mxu0 0.0
        %325 = vmatpush1.msra.mxu0 0.0
        %326 = vmatprep.subr.mxu0 0.0
        %327 = vmatpush1.msra.mxu0 0.0
        %328 = vmatprep.subr.mxu0 0.0
        %329 = vmatpush1.msra.mxu0 0.0
        %330 = vmatprep.subr.mxu0 0.0
        %331 = vmatpush1.msra.mxu0 0.0
        %332 = vmatprep.subr.mxu0 0.0
        %333 = vmatpush1.msra.mxu0 0.0
        %334 = vmatprep.subr.mxu0 0.0
        %335 = vmatpush1.msra.mxu0 0.0
        %336 = vmatprep.subr.mxu0 0.0
        %337 = vmatpush1.msra.mxu0 0.0
        %338 = vmatprep.subr.mxu0 0.0
        %339 = vmatpush1.msra.mxu0 0.0
        %340 = vmatprep.subr.mxu0 0.0
        %341 = vmatpush1.msra.mxu0 0.0
        %342 = vmatprep.subr.mxu0 0.0
        %343 = vmatpush1.msra.mxu0 %v297
        %344 = vmatprep.subr.mxu0 0.0
        %345 = vmatpush2.msra.mxu0 0.0
        %346 = vmatprep.subr.mxu0 0.0
        %347 = vmatpush2.msra.mxu0 0.0
        %348 = vmatprep.subr.mxu0 0.0
        %349 = vmatpush2.msra.mxu0 0.0
        %350 = vmatprep.subr.mxu0 0.0
        %351 = vmatpush2.msra.mxu0 0.0
        %352 = vmatprep.subr.mxu0 0.0
        %353 = vmatpush2.msra.mxu0 0.0
        %354 = vmatprep.subr.mxu0 0.0
        %355 = vmatpush2.msra.mxu0 0.0
        %356 = vmatprep.subr.mxu0 0.0
        %357 = vmatpush2.msra.mxu0 0.0
        %358 = vmatprep.subr.mxu0 0.0
        %359 = vmatpush2.msra.mxu0 0.0
        %360 = vmatprep.subr.mxu0 0.0
        %361 = vmatpush2.msra.mxu0 0.0
        %362 = vmatprep.subr.mxu0 0.0
        %363 = vmatpush2.msra.mxu0 0.0
        %364 = vmatprep.subr.mxu0 0.0
        %365 = vmatpush2.msra.mxu0 0.0
        %366 = vmatprep.subr.mxu0 0.0
        %367 = vmatpush2.msra.mxu0 0.0
        %368 = vmatprep.subr.mxu0 0.0
        %369 = vmatpush2.msra.mxu0 0.0
        %370 = vmatprep.subr.mxu0 0.0
        %371 = vmatpush2.msra.mxu0 0.0
        %372 = vmatprep.subr.mxu0 0.0
        %373 = vmatpush2.msra.mxu0 0.0
        %374 = vmatprep.subr.mxu0 0.0
        %375 = vmatpush2.msra.mxu0 0.0
        %376 = vmatprep.mubr.f32.mxu0 0.0
        %377 = vmatmul.mubr.f32.gmra.mxu0 %v307
        %v378 = vpop.f32.mrf.mxu0
        %v379 = vadd.f32 %v303, %v378
        %v380 = vpop.f32.mrf.mxu0
        %381 = vmatprep.mubr.f32.mxu0 0.0
        %382 = vmatmul.mubr.f32.gmra.mxu0 %v310
        %v383 = vpop.f32.mrf.mxu0
        %v384 = vadd.f32 %v303, %v383
        %v385 = vpop.f32.mrf.mxu0
        %386 = vdwg.mxu0
        %v387 = vmax.f32 %v379, 0.0
        %v388 = vmax.f32 %v384, 0.0
        %v389 = vld [vmem:[#allocation2] sm:$0xff]
        %v390 = vld [vmem:[#allocation2 + $0x8] sm:$0xff]
        %v391 = vld [vmem:[#allocation2 + $0x10] sm:$0xff]
        %v392 = vld [vmem:[#allocation2 + $0x18] sm:$0xff]
        %v393 = vld [vmem:[%s4] sm:$0x1]
        %v395 = vlaneseq
        %v396 = vshrl.u32 %v395, 7
        %v397 = vsub.s32 0, %v396
        %v398 = vrot.slane %v393, %v397
        %vm400 = vcmask 261120
        %v402 = vsel %vm400, %v387, 0
        %v405 = vsel %vm400, %v388, 0
        %407 = vmatprep.subr.mxu0 0.0
        %408 = vmatpush1.msra.mxu0 0.0
        %409 = vmatprep.subr.mxu0 0.0
        %410 = vmatpush1.msra.mxu0 0.0
        %411 = vmatprep.subr.mxu0 0.0
        %412 = vmatpush1.msra.mxu0 0.0
        %413 = vmatprep.subr.mxu0 0.0
        %414 = vmatpush1.msra.mxu0 0.0
        %415 = vmatprep.subr.mxu0 0.0
        %416 = vmatpush1.msra.mxu0 0.0
        %417 = vmatprep.subr.mxu0 0.0
        %418 = vmatpush1.msra.mxu0 0.0
        %419 = vmatprep.subr.mxu0 0.0
        %420 = vmatpush1.msra.mxu0 0.0
        %421 = vmatprep.subr.mxu0 0.0
        %422 = vmatpush1.msra.mxu0 0.0
        %423 = vmatprep.subr.mxu0 0.0
        %424 = vmatpush1.msra.mxu0 0.0
        %425 = vmatprep.subr.mxu0 0.0
        %426 = vmatpush1.msra.mxu0 0.0
        %427 = vmatprep.subr.mxu0 0.0
        %428 = vmatpush1.msra.mxu0 0.0
        %429 = vmatprep.subr.mxu0 0.0
        %430 = vmatpush1.msra.mxu0 0.0
        %431 = vmatprep.subr.mxu0 0.0
        %432 = vmatpush1.msra.mxu0 %v392
        %433 = vmatprep.subr.mxu0 0.0
        %434 = vmatpush1.msra.mxu0 %v391
        %435 = vmatprep.subr.mxu0 0.0
        %436 = vmatpush1.msra.mxu0 %v390
        %437 = vmatprep.subr.mxu0 0.0
        %438 = vmatpush1.msra.mxu0 %v389
        %439 = vmatprep.subr.mxu0 0.0
        %440 = vmatpush2.msra.mxu0 0.0
        %441 = vmatprep.subr.mxu0 0.0
        %442 = vmatpush2.msra.mxu0 0.0
        %443 = vmatprep.subr.mxu0 0.0
        %444 = vmatpush2.msra.mxu0 0.0
        %445 = vmatprep.subr.mxu0 0.0
        %446 = vmatpush2.msra.mxu0 0.0
        %447 = vmatprep.subr.mxu0 0.0
        %448 = vmatpush2.msra.mxu0 0.0
        %449 = vmatprep.subr.mxu0 0.0
        %450 = vmatpush2.msra.mxu0 0.0
        %451 = vmatprep.subr.mxu0 0.0
        %452 = vmatpush2.msra.mxu0 0.0
        %453 = vmatprep.subr.mxu0 0.0
        %454 = vmatpush2.msra.mxu0 0.0
        %455 = vmatprep.subr.mxu0 0.0
        %456 = vmatpush2.msra.mxu0 0.0
        %457 = vmatprep.subr.mxu0 0.0
        %458 = vmatpush2.msra.mxu0 0.0
        %459 = vmatprep.subr.mxu0 0.0
        %460 = vmatpush2.msra.mxu0 0.0
        %461 = vmatprep.subr.mxu0 0.0
        %462 = vmatpush2.msra.mxu0 0.0
        %463 = vmatprep.subr.mxu0 0.0
        %464 = vmatpush2.msra.mxu0 0.0
        %465 = vmatprep.subr.mxu0 0.0
        %466 = vmatpush2.msra.mxu0 0.0
        %467 = vmatprep.subr.mxu0 0.0
        %468 = vmatpush2.msra.mxu0 0.0
        %469 = vmatprep.subr.mxu0 0.0
        %470 = vmatpush2.msra.mxu0 0.0
        %471 = vmatprep.mubr.f32.mxu0 0.0
        %472 = vmatmul.mubr.f32.gmra.mxu0 %v402
        %v473 = vpop.f32.mrf.mxu0
        %v474 = vadd.f32 %v398, %v473
        %v475 = vpop.f32.mrf.mxu0
        %476 = vmatprep.mubr.f32.mxu0 0.0
        %477 = vmatmul.mubr.f32.gmra.mxu0 %v405
        %v478 = vpop.f32.mrf.mxu0
        %v479 = vadd.f32 %v398, %v478
        %v480 = vpop.f32.mrf.mxu0
        %481 = vdwg.mxu0
        %v482 = vmax.f32 %v474, 0.0
        %v483 = vmax.f32 %v479, 0.0
        %v484 = vld [vmem:[%s5] sm:$0xff]
        %v485 = vld [vmem:[%s5 + $0x8] sm:$0xff]
        %v486 = vld [vmem:[%s5 + $0x10] sm:$0xff]
        %v487 = vld [vmem:[%s5 + $0x18] sm:$0xff]
        %v488 = vld [vmem:[%s5 + $0x20] sm:$0xff]
        %v489 = vld [vmem:[%s5 + $0x28] sm:$0xff]
        %v490 = vld [vmem:[%s5 + $0x30] sm:$0xff]
        %v491 = vld [vmem:[%s5 + $0x38] sm:$0xff]
        %v492 = vld [vmem:[%s6] sm:$0x1]
        %v494 = vlaneseq
        %v495 = vshrl.u32 %v494, 7
        %v496 = vsub.s32 0, %v495
        %v497 = vrot.slane %v492, %v496
        %vm499 = vcmask 523264
        %v501 = vsel %vm499, %v482, 0
        %v504 = vsel %vm499, %v483, 0
        %506 = vmatprep.subr.mxu0 0.0
        %507 = vmatpush1.msra.mxu0 0.0
        %508 = vmatprep.subr.mxu0 0.0
        %509 = vmatpush1.msra.mxu0 0.0
        %510 = vmatprep.subr.mxu0 0.0
        %511 = vmatpush1.msra.mxu0 0.0
        %512 = vmatprep.subr.mxu0 0.0
        %513 = vmatpush1.msra.mxu0 0.0
        %514 = vmatprep.subr.mxu0 0.0
        %515 = vmatpush1.msra.mxu0 0.0
        %516 = vmatprep.subr.mxu0 0.0
        %517 = vmatpush1.msra.mxu0 0.0
        %518 = vmatprep.subr.mxu0 0.0
        %519 = vmatpush1.msra.mxu0 0.0
        %520 = vmatprep.subr.mxu0 0.0
        %521 = vmatpush1.msra.mxu0 0.0
        %522 = vmatprep.subr.mxu0 0.0
        %523 = vmatpush1.msra.mxu0 %v491
        %524 = vmatprep.subr.mxu0 0.0
        %525 = vmatpush1.msra.mxu0 %v490
        %526 = vmatprep.subr.mxu0 0.0
        %527 = vmatpush1.msra.mxu0 %v489
        %528 = vmatprep.subr.mxu0 0.0
        %529 = vmatpush1.msra.mxu0 %v488
        %530 = vmatprep.subr.mxu0 0.0
        %531 = vmatpush1.msra.mxu0 %v487
        %532 = vmatprep.subr.mxu0 0.0
        %533 = vmatpush1.msra.mxu0 %v486
        %534 = vmatprep.subr.mxu0 0.0
        %535 = vmatpush1.msra.mxu0 %v485
        %536 = vmatprep.subr.mxu0 0.0
        %537 = vmatpush1.msra.mxu0 %v484
        %538 = vmatprep.subr.mxu0 0.0
        %539 = vmatpush2.msra.mxu0 0.0
        %540 = vmatprep.subr.mxu0 0.0
        %541 = vmatpush2.msra.mxu0 0.0
        %542 = vmatprep.subr.mxu0 0.0
        %543 = vmatpush2.msra.mxu0 0.0
        %544 = vmatprep.subr.mxu0 0.0
        %545 = vmatpush2.msra.mxu0 0.0
        %546 = vmatprep.subr.mxu0 0.0
        %547 = vmatpush2.msra.mxu0 0.0
        %548 = vmatprep.subr.mxu0 0.0
        %549 = vmatpush2.msra.mxu0 0.0
        %550 = vmatprep.subr.mxu0 0.0
        %551 = vmatpush2.msra.mxu0 0.0
        %552 = vmatprep.subr.mxu0 0.0
        %553 = vmatpush2.msra.mxu0 0.0
        %554 = vmatprep.subr.mxu0 0.0
        %555 = vmatpush2.msra.mxu0 0.0
        %556 = vmatprep.subr.mxu0 0.0
        %557 = vmatpush2.msra.mxu0 0.0
        %558 = vmatprep.subr.mxu0 0.0
        %559 = vmatpush2.msra.mxu0 0.0
        %560 = vmatprep.subr.mxu0 0.0
        %561 = vmatpush2.msra.mxu0 0.0
        %562 = vmatprep.subr.mxu0 0.0
        %563 = vmatpush2.msra.mxu0 0.0
        %564 = vmatprep.subr.mxu0 0.0
        %565 = vmatpush2.msra.mxu0 0.0
        %566 = vmatprep.subr.mxu0 0.0
        %567 = vmatpush2.msra.mxu0 0.0
        %568 = vmatprep.subr.mxu0 0.0
        %569 = vmatpush2.msra.mxu0 0.0
        %570 = vmatprep.mubr.f32.mxu0 0.0
        %571 = vmatmul.mubr.f32.gmra.mxu0 %v501
        %v572 = vpop.f32.mrf.mxu0
        %v573 = vadd.f32 %v497, %v572
        %v574 = vpop.f32.mrf.mxu0
        %575 = vmatprep.mubr.f32.mxu0 0.0
        %576 = vmatmul.mubr.f32.gmra.mxu0 %v504
        %v577 = vpop.f32.mrf.mxu0
        %v578 = vadd.f32 %v497, %v577
        %v579 = vpop.f32.mrf.mxu0
        %580 = vdwg.mxu0
        %v581 = vmax.f32 %v573, 0.0
        %v582 = vmax.f32 %v578, 0.0
        %v583 = vpack.c.bf16 %v582, %v581
        %v585 = vunpack.c.l.b16 %v583
        %v586 = vunpack.c.h.b16 %v583
        %v587 = vpack.c.b16 %v585, %v585
        %v588 = vpack.c.b16 %v586, %v586
        %591 = vst [vmem:[%s287] sm:$0xf] %v587
        %592 = vst [vmem:[%s287 + $0x4] sm:$0xf] %v588
        %s593 = sand.u32 %s182, 1
        %s594 = scalar_lea.sflag [#allocation4], %s593
        %s595 = sand.u32 %s182, 1
        %s596 = smul.addr %s595, 8
        %s597 = scalar_lea.vmem [#allocation5], %s596
        // Predicated region
        $region53: #{tpu_custom_call.1} parent=47 // pred_check
          %p598 = pneg %p192
        $region54: #{tpu_custom_call.1} parent=47 // pred_check_branch
          %600 = sbr.rel (%p598) target = $region56
        $region55: #{tpu_custom_call.1} parent=47 // pred_region
          %s601 = smul.u32 2, %s22
          %s603 = ssub.s32 128, 128
          %604 = vsyncadd %s594, %s603
          %s605 = smul.addr %s601, 64
          %s606 = scalar_lea.hbm %s7, %s605
          %s607 = sshll.u32 %s597, 4
          %s608 = int_to_ptr.vmem [resolvable:$true] %s607
          %613 = dma.vmem_to_hbm [thread:$0]  %s608, 128, %s606, %s594, 64, 64, 4
        $region56: #{tpu_custom_call.1} parent=47 // pred_fallthru
          _
      $region48: #{tpu_custom_call.1} parent=5 // pred_fallthru
        _
      %p614 = scmp.le.s32.totalorder 2, %s17
      // Predicated region
      $region57: #{tpu_custom_call.1} parent=5 // pred_check
        %p615 = pneg %p614
      $region58: #{tpu_custom_call.1} parent=5 // pred_check_branch
        %617 = sbr.rel (%p615) target = $region60
      $region59: #{tpu_custom_call.1} parent=5 // pred_region
        %s618 = ssub.s32 %s17, 2
        // Predicated region
        $region61: #{tpu_custom_call.1} parent=59 // pred_check
          %p619 = pneg %p198
        $region62: #{tpu_custom_call.1} parent=59 // pred_check_branch
          %621 = sbr.rel (%p619) target = $region64
        $region63: #{tpu_custom_call.1} parent=59 // pred_region
          %s622 = sand.u32 %s183, 1
          %s623 = scalar_lea.sflag [#allocation4], %s622
          %s624 = sand.u32 %s183, 1
          %s625 = smul.addr %s624, 8
          %s626 = scalar_lea.vmem [#allocation5], %s625
          %627 = dma.done %s623, 128
        $region64: #{tpu_custom_call.1} parent=59 // pred_fallthru
          _
      $region60: #{tpu_custom_call.1} parent=5 // pred_fallthru
        _
    $region6: #{tpu_custom_call.1} parent=1 // loop_footer
      %s21 = sadd.s32 1, %s17
    $region7: #{tpu_custom_call.1} parent=1 // loop_footer_branch
      %16 = sbr.rel target = $region3
    $region8: #{tpu_custom_call.1} parent=1 // loop_exit
      _
    %628 = vsyncpa [#allocation3], 1
    %s629 = scalar_lea.sflag [#allocation3], 1
    %630 = vsyncpa %s629, 1
    %631 = vsyncpa [#allocation4], 1
    %s632 = scalar_lea.sflag [#allocation4], 1
    %633 = vsyncpa %s632, 1

</llo_original>
